<compile_context>
chip_gen: v6e
topology: v6e:2x2x1
jax: 0.10.0
libtpu: 0.0.40
codegen_flags: <defaults>
</compile_context>

<pallas_src>
import functools

import jax
import jax.numpy as jnp
from jax.experimental import pallas as pl
from jax.experimental.pallas import tpu as pltpu


def _log_softmax(x):
    m = jnp.max(x, axis=-1, keepdims=True)
    s = x - m
    return s - jnp.log(jnp.sum(jnp.exp(s), axis=-1, keepdims=True))


def fused_gat_kernel(
    # inputs
    x_ref, s_ref, d_ref,
    w1x_ref, b1x_ref, w1e_ref, b1e_ref,
    wl_ref, bl_ref, wr_ref, br_ref,
    att_ref, wedge_ref, cbias_ref,
    gamma_ref, beta_ref, w3_ref, b3_ref, w4_ref, b4_ref,
    # outputs
    out_ct_ref, out_g_ref,
    # scratch
    x1_scr,
    *, num_head, out_ch, num_nodes, num_gene, batchsize):
    f32 = jnp.float32
    H, C = num_head, out_ch
    HC = H * C
    NEG = f32(-1e30)

    x_raw = x_ref[...]                                   # [N, F]
    s = s_ref[...].astype(f32)                           # [E, N] one-hot(src), exact
    d = d_ref[...].astype(f32)                           # [E, N] one-hot(dst), exact

    # ---- node / edge input projections -------------------------------------
    # x = relu(lin1_x(x_raw))
    x = jnp.dot(x_raw, w1x_ref[...], preferred_element_type=f32) + b1x_ref[...]
    x = jnp.maximum(x, 0.0)

    # x_edge = relu(lin1_edge(x_raw[src] * x_raw[dst]));  ep = lin_edge(x_edge)
    xs = jnp.dot(s, x_raw, preferred_element_type=f32)   # gather src rows
    xd = jnp.dot(d, x_raw, preferred_element_type=f32)   # gather dst rows
    e_h = jnp.dot(xs * xd, w1e_ref[...], preferred_element_type=f32) + b1e_ref[...]
    e_h = jnp.maximum(e_h, 0.0)
    ep = jnp.dot(e_h, wedge_ref[...], preferred_element_type=f32)      # [E, HC]

    # ---- GATConvW projections + gathers ------------------------------------
    xl = jnp.dot(x, wl_ref[...], preferred_element_type=f32) + bl_ref[...]   # [N, HC]
    xr = jnp.dot(x, wr_ref[...], preferred_element_type=f32) + br_ref[...]   # [N, HC]
    xj = jnp.dot(s, xl, preferred_element_type=f32)      # source features per edge
    xi = jnp.dot(d, xr, preferred_element_type=f32)      # target features per edge

    msg = xi + xj + ep
    msg = jnp.where(msg > 0, msg, 0.2 * msg)             # leaky_relu(0.2)

    att = att_ref[...]                                   # [H, C]
    d_mask = d > 0.5

    # ---- per-head attention, exact segment softmax, weighted scatter-add ----
    # Only the per-node mean over the H*C channels is used later, so accumulate a
    # lane-dense [1, N] row of per-node sums (never build the [N, HC] output).
    node_sum = jnp.zeros((1, d.shape[1]), f32)
    for h in range(H):                                   # H is small & static
        lo = h * C
        msg_h = msg[:, lo:lo + C]                        # [E, C]
        xj_h = xj[:, lo:lo + C]                          # [E, C]
        att_h = att[h:h + 1, :]                          # [1, C]

        alpha = jnp.sum(msg_h * att_h, axis=1, keepdims=True)            # [E, 1]
        # exact per-target-node max (robust segment softmax)
        seg_max = jnp.max(jnp.where(d_mask, alpha, NEG), axis=0, keepdims=True)  # [1, N]
        shift = jnp.sum(d * seg_max, axis=1, keepdims=True)              # [E, 1]
        ea = jnp.exp(alpha - shift)                                      # [E, 1]
        den_n = jnp.sum(d * ea, axis=0, keepdims=True)                   # [1, N]
        den_e = jnp.sum(d * den_n, axis=1, keepdims=True)                # [E, 1]
        w = ea * pl.reciprocal(den_e, approx=True)                       # softmax weight

        wsum = jnp.sum(xj_h * w, axis=1, keepdims=True)                  # [E, 1]
        node_sum = node_sum + jnp.sum(d * wsum, axis=0, keepdims=True)   # scatter-add

    bias_sum = jnp.sum(cbias_ref[...], axis=1, keepdims=True)            # [1, 1]
    node_mean = (node_sum + bias_sum) * (1.0 / HC)                       # [1, N]

    # ---- x_1 = mean(conv_out).view(B, num_nodes)[:, -num_gene:] -------------
    for b in range(batchsize):                           # static
        start = b * num_nodes + (num_nodes - num_gene)
        x1_scr[b:b + 1, :] = node_mean[0:1, start:start + num_gene]
    x1 = x1_scr[...]                                     # [B, G]

    # ---- LayerNorm -> lin3 + relu -> lin4 -> two log_softmax heads ----------
    mu = jnp.mean(x1, axis=-1, keepdims=True)
    var = jnp.mean((x1 - mu) ** 2, axis=-1, keepdims=True)
    x1n = (x1 - mu) * jax.lax.rsqrt(var + 1e-5) * gamma_ref[...] + beta_ref[...]

    x2 = jnp.dot(x1n, w3_ref[...], preferred_element_type=f32) + b3_ref[...]
    x2 = jnp.maximum(x2, 0.0)
    # TODO(synk): F.dropout(x_2, p=0.5) is training-only -> eval no-op here.
    x2 = jnp.dot(x2, w4_ref[...], preferred_element_type=f32) + b4_ref[...]

    out_ct_ref[...] = _log_softmax(x2)
    out_g_ref[...] = _log_softmax(x1n)


@functools.partial(
    jax.jit,
    static_argnames=("batchsize", "num_nodes", "num_gene", "num_head",
                     "hidden_channels", "num_celltype"))
def gat_label_relu_forward(p, x, edge_index, *, batchsize, num_nodes, num_gene,
                           num_head, hidden_channels, num_celltype):
    N = x.shape[0]
    H, C = num_head, hidden_channels          # GATConvW out_channels == hidden_channels

    src, dst = edge_index[0], edge_index[1]
    # one-hot incidence matrices in bf16 (0/1 exact): gather/scatter as MXU matmuls
    S = jax.nn.one_hot(src, N, dtype=jnp.bfloat16)      # [E, N]
    D = jax.nn.one_hot(dst, N, dtype=jnp.bfloat16)      # [E, N]

    kernel = functools.partial(
        fused_gat_kernel, num_head=H, out_ch=C,
        num_nodes=num_nodes, num_gene=num_gene, batchsize=batchsize)

    vspec = pl.BlockSpec(memory_space=pltpu.MemorySpace.VMEM)
    out_ct, out_g = pl.pallas_call(
        kernel,
        out_shape=(jax.ShapeDtypeStruct((batchsize, num_celltype), jnp.float32),
                   jax.ShapeDtypeStruct((batchsize, num_gene), jnp.float32)),
        in_specs=[vspec] * 20,
        out_specs=(vspec, vspec),
        scratch_shapes=[pltpu.VMEM((batchsize, num_gene), jnp.float32)],
    )(x, S, D,
      p["w1x"], p["b1x"], p["w1e"], p["b1e"],
      p["wl"], p["bl"], p["wr"], p["br"],
      p["att"], p["wedge"], p["conv_bias"],
      p["gamma"], p["beta"], p["w3"], p["b3"], p["w4"], p["b4"])
    return out_ct, out_g


if __name__ == "__main__":
    # small, module-consistent shapes
    B = 2                  # graphs in the batch (static -> no jnp.unique host sync)
    num_nodes = 16         # nodes per graph
    input_channels = 4
    hidden_channels = 8
    num_head = 2
    num_gene = 8
    num_celltype = 4

    C = hidden_channels                 # GATConvW out_channels
    HC = num_head * C
    N = B * num_nodes

    # deterministic graph: bidirectional ring within each graph
    src_l, dst_l = [], []
    for g in range(B):
        base = g * num_nodes
        for i in range(num_nodes):
            j = (i + 1) % num_nodes
            src_l += [base + i, base + j]
            dst_l += [base + j, base + i]
    edge_index = jnp.array([src_l, dst_l], dtype=jnp.int32)          # [2, E]
    batch = jnp.repeat(jnp.arange(B, dtype=jnp.int32), num_nodes)    # batchsize is static

    key = jax.random.PRNGKey(0)
    keys = jax.random.split(key, 16)
    x = jax.random.normal(keys[0], (N, input_channels), jnp.float32)

    def init(k, shape, scale=0.1):
        return (scale * jax.random.normal(k, shape)).astype(jnp.float32)

    params = dict(
        # lin1_x / lin1_edge
        w1x=init(keys[1], (input_channels, hidden_channels)), b1x=init(keys[2], (1, hidden_channels)),
        w1e=init(keys[3], (input_channels, hidden_channels)), b1e=init(keys[4], (1, hidden_channels)),
        # GATConvW: lin_l / lin_r / att / lin_edge / bias
        wl=init(keys[5], (hidden_channels, HC)), bl=init(keys[6], (1, HC)),
        wr=init(keys[7], (hidden_channels, HC)), br=init(keys[8], (1, HC)),
        att=init(keys[9], (num_head, C)),
        wedge=init(keys[10], (hidden_channels, HC)),
        conv_bias=jnp.zeros((1, HC), jnp.float32),    # zeros() init in reset_parameters
        # LayerNorm / lin3 / lin4
        gamma=jnp.ones((1, num_gene), jnp.float32),
        beta=jnp.zeros((1, num_gene), jnp.float32),
        w3=init(keys[11], (num_gene, num_gene)), b3=init(keys[12], (1, num_gene)),
        w4=init(keys[13], (num_gene, num_celltype)), b4=init(keys[14], (1, num_celltype)),
    )

    out_logp, x1_logp = gat_label_relu_forward(
        params, x, edge_index,
        batchsize=B, num_nodes=num_nodes, num_gene=num_gene,
        num_head=num_head, hidden_channels=hidden_channels,
        num_celltype=num_celltype,
    )
    jax.block_until_ready((out_logp, x1_logp))
    assert out_logp.shape == (B, num_celltype)
    assert x1_logp.shape == (B, num_gene)
    print("KERNEL_OK")
</pallas_src>

<mosaic_0001>
module attributes {stable_mosaic.version = 11 : i64} {
  func.func @fused_gat_kernel(%arg0: memref<32x4xf32, #tpu.memory_space<vmem>>, %arg1: memref<64x32xbf16, #tpu.memory_space<vmem>>, %arg2: memref<64x32xbf16, #tpu.memory_space<vmem>>, %arg3: memref<4x8xf32, #tpu.memory_space<vmem>>, %arg4: memref<1x8xf32, #tpu.memory_space<vmem>>, %arg5: memref<4x8xf32, #tpu.memory_space<vmem>>, %arg6: memref<1x8xf32, #tpu.memory_space<vmem>>, %arg7: memref<8x16xf32, #tpu.memory_space<vmem>>, %arg8: memref<1x16xf32, #tpu.memory_space<vmem>>, %arg9: memref<8x16xf32, #tpu.memory_space<vmem>>, %arg10: memref<1x16xf32, #tpu.memory_space<vmem>>, %arg11: memref<2x8xf32, #tpu.memory_space<vmem>>, %arg12: memref<8x16xf32, #tpu.memory_space<vmem>>, %arg13: memref<1x16xf32, #tpu.memory_space<vmem>>, %arg14: memref<1x8xf32, #tpu.memory_space<vmem>>, %arg15: memref<1x8xf32, #tpu.memory_space<vmem>>, %arg16: memref<8x8xf32, #tpu.memory_space<vmem>>, %arg17: memref<1x8xf32, #tpu.memory_space<vmem>>, %arg18: memref<8x4xf32, #tpu.memory_space<vmem>>, %arg19: memref<1x4xf32, #tpu.memory_space<vmem>>, %arg20: memref<2x4xf32, #tpu.memory_space<vmem>>, %arg21: memref<2x8xf32, #tpu.memory_space<vmem>>, %arg22: memref<2x8xf32, #tpu.memory_space<vmem>>) attributes {dimension_semantics = [], scalar_prefetch = 0 : i64, scratch_operands = 1 : i64, tpu.core_type = #tpu.core_type<tc>} {
    %c0 = arith.constant 0 : index
    %c0_0 = arith.constant 0 : index
    %0 = vector.load %arg0[%c0, %c0_0] : memref<32x4xf32, #tpu.memory_space<vmem>>, vector<32x4xf32>
    %c0_1 = arith.constant 0 : index
    %c0_2 = arith.constant 0 : index
    %1 = vector.load %arg1[%c0_1, %c0_2] : memref<64x32xbf16, #tpu.memory_space<vmem>>, vector<64x32xbf16>
    %2 = arith.extf %1 : vector<64x32xbf16> to vector<64x32xf32>
    %c0_3 = arith.constant 0 : index
    %c0_4 = arith.constant 0 : index
    %3 = vector.load %arg2[%c0_3, %c0_4] : memref<64x32xbf16, #tpu.memory_space<vmem>>, vector<64x32xbf16>
    %4 = arith.extf %3 : vector<64x32xbf16> to vector<64x32xf32>
    %c0_5 = arith.constant 0 : index
    %c0_6 = arith.constant 0 : index
    %5 = vector.load %arg3[%c0_5, %c0_6] : memref<4x8xf32, #tpu.memory_space<vmem>>, vector<4x8xf32>
    %cst = arith.constant dense<0.000000e+00> : vector<32x8xf32>
    %6 = tpu.matmul %0, %5, %cst {dimension_numbers = #tpu.dot_dimension_numbers<[1], [0], [0], [1], [0, 0, 1, 1], [], []>} : vector<32x4xf32>, vector<4x8xf32>, vector<32x8xf32> -> vector<32x8xf32>
    %c0_7 = arith.constant 0 : index
    %c0_8 = arith.constant 0 : index
    %7 = vector.load %arg4[%c0_7, %c0_8] : memref<1x8xf32, #tpu.memory_space<vmem>>, vector<1x8xf32>
    %8 = vector.broadcast %7 : vector<1x8xf32> to vector<32x8xf32>
    %9 = arith.addf %6, %8 : vector<32x8xf32>
    %cst_9 = arith.constant 0.000000e+00 : f32
    %10 = vector.broadcast %cst_9 : f32 to vector<32x8xf32>
    %11 = arith.maximumf %9, %10 : vector<32x8xf32>
    %cst_10 = arith.constant dense<0.000000e+00> : vector<64x4xf32>
    %12 = tpu.matmul %2, %0, %cst_10 {dimension_numbers = #tpu.dot_dimension_numbers<[1], [0], [0], [1], [0, 0, 1, 1], [], []>} : vector<64x32xf32>, vector<32x4xf32>, vector<64x4xf32> -> vector<64x4xf32>
    %cst_11 = arith.constant dense<0.000000e+00> : vector<64x4xf32>
    %13 = tpu.matmul %4, %0, %cst_11 {dimension_numbers = #tpu.dot_dimension_numbers<[1], [0], [0], [1], [0, 0, 1, 1], [], []>} : vector<64x32xf32>, vector<32x4xf32>, vector<64x4xf32> -> vector<64x4xf32>
    %14 = arith.mulf %12, %13 : vector<64x4xf32>
    %c0_12 = arith.constant 0 : index
    %c0_13 = arith.constant 0 : index
    %15 = vector.load %arg5[%c0_12, %c0_13] : memref<4x8xf32, #tpu.memory_space<vmem>>, vector<4x8xf32>
    %cst_14 = arith.constant dense<0.000000e+00> : vector<64x8xf32>
    %16 = tpu.matmul %14, %15, %cst_14 {dimension_numbers = #tpu.dot_dimension_numbers<[1], [0], [0], [1], [0, 0, 1, 1], [], []>} : vector<64x4xf32>, vector<4x8xf32>, vector<64x8xf32> -> vector<64x8xf32>
    %c0_15 = arith.constant 0 : index
    %c0_16 = arith.constant 0 : index
    %17 = vector.load %arg6[%c0_15, %c0_16] : memref<1x8xf32, #tpu.memory_space<vmem>>, vector<1x8xf32>
    %18 = vector.broadcast %17 : vector<1x8xf32> to vector<64x8xf32>
    %19 = arith.addf %16, %18 : vector<64x8xf32>
    %cst_17 = arith.constant 0.000000e+00 : f32
    %20 = vector.broadcast %cst_17 : f32 to vector<64x8xf32>
    %21 = arith.maximumf %19, %20 : vector<64x8xf32>
    %c0_18 = arith.constant 0 : index
    %c0_19 = arith.constant 0 : index
    %22 = vector.load %arg12[%c0_18, %c0_19] : memref<8x16xf32, #tpu.memory_space<vmem>>, vector<8x16xf32>
    %cst_20 = arith.constant dense<0.000000e+00> : vector<64x16xf32>
    %23 = tpu.matmul %21, %22, %cst_20 {dimension_numbers = #tpu.dot_dimension_numbers<[1], [0], [0], [1], [0, 0, 1, 1], [], []>} : vector<64x8xf32>, vector<8x16xf32>, vector<64x16xf32> -> vector<64x16xf32>
    %c0_21 = arith.constant 0 : index
    %c0_22 = arith.constant 0 : index
    %24 = vector.load %arg7[%c0_21, %c0_22] : memref<8x16xf32, #tpu.memory_space<vmem>>, vector<8x16xf32>
    %cst_23 = arith.constant dense<0.000000e+00> : vector<32x16xf32>
    %25 = tpu.matmul %11, %24, %cst_23 {dimension_numbers = #tpu.dot_dimension_numbers<[1], [0], [0], [1], [0, 0, 1, 1], [], []>} : vector<32x8xf32>, vector<8x16xf32>, vector<32x16xf32> -> vector<32x16xf32>
    %c0_24 = arith.constant 0 : index
    %c0_25 = arith.constant 0 : index
    %26 = vector.load %arg8[%c0_24, %c0_25] : memref<1x16xf32, #tpu.memory_space<vmem>>, vector<1x16xf32>
    %27 = vector.broadcast %26 : vector<1x16xf32> to vector<32x16xf32>
    %28 = arith.addf %25, %27 : vector<32x16xf32>
    %c0_26 = arith.constant 0 : index
    %c0_27 = arith.constant 0 : index
    %29 = vector.load %arg9[%c0_26, %c0_27] : memref<8x16xf32, #tpu.memory_space<vmem>>, vector<8x16xf32>
    %cst_28 = arith.constant dense<0.000000e+00> : vector<32x16xf32>
    %30 = tpu.matmul %11, %29, %cst_28 {dimension_numbers = #tpu.dot_dimension_numbers<[1], [0], [0], [1], [0, 0, 1, 1], [], []>} : vector<32x8xf32>, vector<8x16xf32>, vector<32x16xf32> -> vector<32x16xf32>
    %c0_29 = arith.constant 0 : index
    %c0_30 = arith.constant 0 : index
    %31 = vector.load %arg10[%c0_29, %c0_30] : memref<1x16xf32, #tpu.memory_space<vmem>>, vector<1x16xf32>
    %32 = vector.broadcast %31 : vector<1x16xf32> to vector<32x16xf32>
    %33 = arith.addf %30, %32 : vector<32x16xf32>
    %cst_31 = arith.constant dense<0.000000e+00> : vector<64x16xf32>
    %34 = tpu.matmul %2, %28, %cst_31 {dimension_numbers = #tpu.dot_dimension_numbers<[1], [0], [0], [1], [0, 0, 1, 1], [], []>} : vector<64x32xf32>, vector<32x16xf32>, vector<64x16xf32> -> vector<64x16xf32>
    %cst_32 = arith.constant dense<0.000000e+00> : vector<64x16xf32>
    %35 = tpu.matmul %4, %33, %cst_32 {dimension_numbers = #tpu.dot_dimension_numbers<[1], [0], [0], [1], [0, 0, 1, 1], [], []>} : vector<64x32xf32>, vector<32x16xf32>, vector<64x16xf32> -> vector<64x16xf32>
    %36 = arith.addf %35, %34 : vector<64x16xf32>
    %37 = arith.addf %36, %23 : vector<64x16xf32>
    %cst_33 = arith.constant 0.000000e+00 : f32
    %38 = vector.broadcast %cst_33 : f32 to vector<64x16xf32>
    %39 = arith.cmpf ogt, %37, %38 : vector<64x16xf32>
    %cst_34 = arith.constant 2.000000e-01 : f32
    %40 = vector.broadcast %cst_34 : f32 to vector<64x16xf32>
    %41 = arith.mulf %40, %37 : vector<64x16xf32>
    %42 = arith.select %39, %37, %41 : vector<64x16xi1>, vector<64x16xf32>
    %c0_35 = arith.constant 0 : index
    %c0_36 = arith.constant 0 : index
    %43 = vector.load %arg11[%c0_35, %c0_36] : memref<2x8xf32, #tpu.memory_space<vmem>>, vector<2x8xf32>
    %cst_37 = arith.constant 5.000000e-01 : f32
    %44 = vector.broadcast %cst_37 : f32 to vector<64x32xf32>
    %45 = arith.cmpf ogt, %4, %44 : vector<64x32xf32>
    %cst_38 = arith.constant 0.000000e+00 : f32
    %46 = vector.broadcast %cst_38 : f32 to vector<1x32xf32>
    %47 = vector.extract_strided_slice %42 {offsets = [0, 0], sizes = [64, 8], strides = [1, 1]} : vector<64x16xf32> to vector<64x8xf32>
    %48 = vector.extract_strided_slice %34 {offsets = [0, 0], sizes = [64, 8], strides = [1, 1]} : vector<64x16xf32> to vector<64x8xf32>
    %49 = vector.extract_strided_slice %43 {offsets = [0, 0], sizes = [1, 8], strides = [1, 1]} : vector<2x8xf32> to vector<1x8xf32>
    %50 = vector.broadcast %49 : vector<1x8xf32> to vector<64x8xf32>
    %51 = arith.mulf %47, %50 : vector<64x8xf32>
    %cst_39 = arith.constant dense<0.000000e+00> : vector<64xf32>
    %52 = vector.multi_reduction <add>, %51, %cst_39 [1] : vector<64x8xf32> to vector<64xf32>
    %53 = vector.shape_cast %52 : vector<64xf32> to vector<64x1xf32>
    %cst_40 = arith.constant -1.000000e+30 : f32
    %54 = vector.shape_cast %53 : vector<64x1xf32> to vector<64x1xf32>
    %55 = vector.broadcast %54 : vector<64x1xf32> to vector<64x32xf32>
    %56 = vector.broadcast %cst_40 : f32 to vector<64x32xf32>
    %57 = arith.select %45, %55, %56 : vector<64x32xi1>, vector<64x32xf32>
    %cst_41 = arith.constant dense<0xFF800000> : vector<32xf32>
    %58 = vector.multi_reduction <maximumf>, %57, %cst_41 [0] : vector<64x32xf32> to vector<32xf32>
    %59 = vector.shape_cast %58 : vector<32xf32> to vector<1x32xf32>
    %60 = vector.broadcast %59 : vector<1x32xf32> to vector<64x32xf32>
    %61 = arith.mulf %4, %60 : vector<64x32xf32>
    %cst_42 = arith.constant dense<0.000000e+00> : vector<64xf32>
    %62 = vector.multi_reduction <add>, %61, %cst_42 [1] : vector<64x32xf32> to vector<64xf32>
    %63 = vector.shape_cast %62 : vector<64xf32> to vector<64x1xf32>
    %64 = arith.subf %53, %63 : vector<64x1xf32>
    %65 = math.exp %64 : vector<64x1xf32>
    %66 = vector.broadcast %65 : vector<64x1xf32> to vector<64x32xf32>
    %67 = arith.mulf %4, %66 : vector<64x32xf32>
    %cst_43 = arith.constant dense<0.000000e+00> : vector<32xf32>
    %68 = vector.multi_reduction <add>, %67, %cst_43 [0] : vector<64x32xf32> to vector<32xf32>
    %69 = vector.shape_cast %68 : vector<32xf32> to vector<1x32xf32>
    %70 = vector.broadcast %69 : vector<1x32xf32> to vector<64x32xf32>
    %71 = arith.mulf %4, %70 : vector<64x32xf32>
    %cst_44 = arith.constant dense<0.000000e+00> : vector<64xf32>
    %72 = vector.multi_reduction <add>, %71, %cst_44 [1] : vector<64x32xf32> to vector<64xf32>
    %73 = vector.shape_cast %72 : vector<64xf32> to vector<64x1xf32>
    %74 = tpu.reciprocal %73 {approx = true} : vector<64x1xf32> -> vector<64x1xf32>
    %75 = arith.mulf %65, %74 : vector<64x1xf32>
    %76 = vector.broadcast %75 : vector<64x1xf32> to vector<64x8xf32>
    %77 = arith.mulf %48, %76 : vector<64x8xf32>
    %cst_45 = arith.constant dense<0.000000e+00> : vector<64xf32>
    %78 = vector.multi_reduction <add>, %77, %cst_45 [1] : vector<64x8xf32> to vector<64xf32>
    %79 = vector.shape_cast %78 : vector<64xf32> to vector<64x1xf32>
    %80 = vector.broadcast %79 : vector<64x1xf32> to vector<64x32xf32>
    %81 = arith.mulf %4, %80 : vector<64x32xf32>
    %cst_46 = arith.constant dense<0.000000e+00> : vector<32xf32>
    %82 = vector.multi_reduction <add>, %81, %cst_46 [0] : vector<64x32xf32> to vector<32xf32>
    %83 = vector.shape_cast %82 : vector<32xf32> to vector<1x32xf32>
    %84 = arith.addf %46, %83 : vector<1x32xf32>
    %85 = vector.extract_strided_slice %42 {offsets = [0, 8], sizes = [64, 8], strides = [1, 1]} : vector<64x16xf32> to vector<64x8xf32>
    %86 = vector.extract_strided_slice %34 {offsets = [0, 8], sizes = [64, 8], strides = [1, 1]} : vector<64x16xf32> to vector<64x8xf32>
    %87 = vector.extract_strided_slice %43 {offsets = [1, 0], sizes = [1, 8], strides = [1, 1]} : vector<2x8xf32> to vector<1x8xf32>
    %88 = vector.broadcast %87 : vector<1x8xf32> to vector<64x8xf32>
    %89 = arith.mulf %85, %88 : vector<64x8xf32>
    %cst_47 = arith.constant dense<0.000000e+00> : vector<64xf32>
    %90 = vector.multi_reduction <add>, %89, %cst_47 [1] : vector<64x8xf32> to vector<64xf32>
    %91 = vector.shape_cast %90 : vector<64xf32> to vector<64x1xf32>
    %cst_48 = arith.constant -1.000000e+30 : f32
    %92 = vector.shape_cast %91 : vector<64x1xf32> to vector<64x1xf32>
    %93 = vector.broadcast %92 : vector<64x1xf32> to vector<64x32xf32>
    %94 = vector.broadcast %cst_48 : f32 to vector<64x32xf32>
    %95 = arith.select %45, %93, %94 : vector<64x32xi1>, vector<64x32xf32>
    %cst_49 = arith.constant dense<0xFF800000> : vector<32xf32>
    %96 = vector.multi_reduction <maximumf>, %95, %cst_49 [0] : vector<64x32xf32> to vector<32xf32>
    %97 = vector.shape_cast %96 : vector<32xf32> to vector<1x32xf32>
    %98 = vector.broadcast %97 : vector<1x32xf32> to vector<64x32xf32>
    %99 = arith.mulf %4, %98 : vector<64x32xf32>
    %cst_50 = arith.constant dense<0.000000e+00> : vector<64xf32>
    %100 = vector.multi_reduction <add>, %99, %cst_50 [1] : vector<64x32xf32> to vector<64xf32>
    %101 = vector.shape_cast %100 : vector<64xf32> to vector<64x1xf32>
    %102 = arith.subf %91, %101 : vector<64x1xf32>
    %103 = math.exp %102 : vector<64x1xf32>
    %104 = vector.broadcast %103 : vector<64x1xf32> to vector<64x32xf32>
    %105 = arith.mulf %4, %104 : vector<64x32xf32>
    %cst_51 = arith.constant dense<0.000000e+00> : vector<32xf32>
    %106 = vector.multi_reduction <add>, %105, %cst_51 [0] : vector<64x32xf32> to vector<32xf32>
    %107 = vector.shape_cast %106 : vector<32xf32> to vector<1x32xf32>
    %108 = vector.broadcast %107 : vector<1x32xf32> to vector<64x32xf32>
    %109 = arith.mulf %4, %108 : vector<64x32xf32>
    %cst_52 = arith.constant dense<0.000000e+00> : vector<64xf32>
    %110 = vector.multi_reduction <add>, %109, %cst_52 [1] : vector<64x32xf32> to vector<64xf32>
    %111 = vector.shape_cast %110 : vector<64xf32> to vector<64x1xf32>
    %112 = tpu.reciprocal %111 {approx = true} : vector<64x1xf32> -> vector<64x1xf32>
    %113 = arith.mulf %103, %112 : vector<64x1xf32>
    %114 = vector.broadcast %113 : vector<64x1xf32> to vector<64x8xf32>
    %115 = arith.mulf %86, %114 : vector<64x8xf32>
    %cst_53 = arith.constant dense<0.000000e+00> : vector<64xf32>
    %116 = vector.multi_reduction <add>, %115, %cst_53 [1] : vector<64x8xf32> to vector<64xf32>
    %117 = vector.shape_cast %116 : vector<64xf32> to vector<64x1xf32>
    %118 = vector.broadcast %117 : vector<64x1xf32> to vector<64x32xf32>
    %119 = arith.mulf %4, %118 : vector<64x32xf32>
    %cst_54 = arith.constant dense<0.000000e+00> : vector<32xf32>
    %120 = vector.multi_reduction <add>, %119, %cst_54 [0] : vector<64x32xf32> to vector<32xf32>
    %121 = vector.shape_cast %120 : vector<32xf32> to vector<1x32xf32>
    %122 = arith.addf %84, %121 : vector<1x32xf32>
    %c0_55 = arith.constant 0 : index
    %c0_56 = arith.constant 0 : index
    %123 = vector.load %arg13[%c0_55, %c0_56] : memref<1x16xf32, #tpu.memory_space<vmem>>, vector<1x16xf32>
    %cst_57 = arith.constant dense<0.000000e+00> : vector<1xf32>
    %124 = vector.multi_reduction <add>, %123, %cst_57 [1] : vector<1x16xf32> to vector<1xf32>
    %125 = vector.shape_cast %124 : vector<1xf32> to vector<1x1xf32>
    %126 = vector.broadcast %125 : vector<1x1xf32> to vector<1x32xf32>
    %127 = arith.addf %122, %126 : vector<1x32xf32>
    %cst_58 = arith.constant 6.250000e-02 : f32
    %128 = vector.broadcast %cst_58 : f32 to vector<1x32xf32>
    %129 = arith.mulf %127, %128 : vector<1x32xf32>
    %130 = vector.extract_strided_slice %129 {offsets = [0, 8], sizes = [1, 8], strides = [1, 1]} : vector<1x32xf32> to vector<1x8xf32>
    %c0_59 = arith.constant 0 : index
    %c0_60 = arith.constant 0 : index
    %131 = vector.load %arg22[%c0_59, %c0_60] : memref<2x8xf32, #tpu.memory_space<vmem>>, vector<1x8xf32>
    tpu.vector_store %arg22[%c0_59, %c0_60], %130 {strides = array<i32>} : memref<2x8xf32, #tpu.memory_space<vmem>>, vector<1x8xf32>,
    %132 = vector.extract_strided_slice %129 {offsets = [0, 24], sizes = [1, 8], strides = [1, 1]} : vector<1x32xf32> to vector<1x8xf32>
    %c1 = arith.constant 1 : index
    %c0_61 = arith.constant 0 : index
    %133 = vector.load %arg22[%c1, %c0_61] : memref<2x8xf32, #tpu.memory_space<vmem>>, vector<1x8xf32>
    tpu.vector_store %arg22[%c1, %c0_61], %132 {strides = array<i32>} : memref<2x8xf32, #tpu.memory_space<vmem>>, vector<1x8xf32>,
    %c0_62 = arith.constant 0 : index
    %c0_63 = arith.constant 0 : index
    %134 = vector.load %arg22[%c0_62, %c0_63] : memref<2x8xf32, #tpu.memory_space<vmem>>, vector<2x8xf32>
    %cst_64 = arith.constant dense<0.000000e+00> : vector<2xf32>
    %135 = vector.multi_reduction <add>, %134, %cst_64 [1] : vector<2x8xf32> to vector<2xf32>
    %136 = vector.shape_cast %135 : vector<2xf32> to vector<2x1xf32>
    %cst_65 = arith.constant 8.000000e+00 : f32
    %137 = vector.broadcast %cst_65 : f32 to vector<2x1xf32>
    %138 = arith.divf %136, %137 : vector<2x1xf32>
    %139 = vector.broadcast %138 : vector<2x1xf32> to vector<2x8xf32>
    %140 = arith.subf %134, %139 : vector<2x8xf32>
    %141 = arith.mulf %140, %140 : vector<2x8xf32>
    %cst_66 = arith.constant dense<0.000000e+00> : vector<2xf32>
    %142 = vector.multi_reduction <add>, %141, %cst_66 [1] : vector<2x8xf32> to vector<2xf32>
    %143 = vector.shape_cast %142 : vector<2xf32> to vector<2x1xf32>
    %cst_67 = arith.constant 8.000000e+00 : f32
    %144 = vector.broadcast %cst_67 : f32 to vector<2x1xf32>
    %145 = arith.divf %143, %144 : vector<2x1xf32>
    %146 = vector.broadcast %138 : vector<2x1xf32> to vector<2x8xf32>
    %147 = arith.subf %134, %146 : vector<2x8xf32>
    %cst_68 = arith.constant 9.99999974E-6 : f32
    %148 = vector.broadcast %cst_68 : f32 to vector<2x1xf32>
    %149 = arith.addf %145, %148 : vector<2x1xf32>
    %150 = math.rsqrt %149 : vector<2x1xf32>
    %151 = vector.broadcast %150 : vector<2x1xf32> to vector<2x8xf32>
    %152 = arith.mulf %147, %151 : vector<2x8xf32>
    %c0_69 = arith.constant 0 : index
    %c0_70 = arith.constant 0 : index
    %153 = vector.load %arg14[%c0_69, %c0_70] : memref<1x8xf32, #tpu.memory_space<vmem>>, vector<1x8xf32>
    %154 = vector.broadcast %153 : vector<1x8xf32> to vector<2x8xf32>
    %155 = arith.mulf %152, %154 : vector<2x8xf32>
    %c0_71 = arith.constant 0 : index
    %c0_72 = arith.constant 0 : index
    %156 = vector.load %arg15[%c0_71, %c0_72] : memref<1x8xf32, #tpu.memory_space<vmem>>, vector<1x8xf32>
    %157 = vector.broadcast %156 : vector<1x8xf32> to vector<2x8xf32>
    %158 = arith.addf %155, %157 : vector<2x8xf32>
    %c0_73 = arith.constant 0 : index
    %c0_74 = arith.constant 0 : index
    %159 = vector.load %arg16[%c0_73, %c0_74] : memref<8x8xf32, #tpu.memory_space<vmem>>, vector<8x8xf32>
    %cst_75 = arith.constant dense<0.000000e+00> : vector<2x8xf32>
    %160 = tpu.matmul %158, %159, %cst_75 {dimension_numbers = #tpu.dot_dimension_numbers<[1], [0], [0], [1], [0, 0, 1, 1], [], []>} : vector<2x8xf32>, vector<8x8xf32>, vector<2x8xf32> -> vector<2x8xf32>
    %c0_76 = arith.constant 0 : index
    %c0_77 = arith.constant 0 : index
    %161 = vector.load %arg17[%c0_76, %c0_77] : memref<1x8xf32, #tpu.memory_space<vmem>>, vector<1x8xf32>
    %162 = vector.broadcast %161 : vector<1x8xf32> to vector<2x8xf32>
    %163 = arith.addf %160, %162 : vector<2x8xf32>
    %cst_78 = arith.constant 0.000000e+00 : f32
    %164 = vector.broadcast %cst_78 : f32 to vector<2x8xf32>
    %165 = arith.maximumf %163, %164 : vector<2x8xf32>
    %c0_79 = arith.constant 0 : index
    %c0_80 = arith.constant 0 : index
    %166 = vector.load %arg18[%c0_79, %c0_80] : memref<8x4xf32, #tpu.memory_space<vmem>>, vector<8x4xf32>
    %cst_81 = arith.constant dense<0.000000e+00> : vector<2x4xf32>
    %167 = tpu.matmul %165, %166, %cst_81 {dimension_numbers = #tpu.dot_dimension_numbers<[1], [0], [0], [1], [0, 0, 1, 1], [], []>} : vector<2x8xf32>, vector<8x4xf32>, vector<2x4xf32> -> vector<2x4xf32>
    %c0_82 = arith.constant 0 : index
    %c0_83 = arith.constant 0 : index
    %168 = vector.load %arg19[%c0_82, %c0_83] : memref<1x4xf32, #tpu.memory_space<vmem>>, vector<1x4xf32>
    %169 = vector.broadcast %168 : vector<1x4xf32> to vector<2x4xf32>
    %170 = arith.addf %167, %169 : vector<2x4xf32>
    %cst_84 = arith.constant dense<0xFF800000> : vector<2xf32>
    %171 = vector.multi_reduction <maximumf>, %170, %cst_84 [1] : vector<2x4xf32> to vector<2xf32>
    %172 = vector.shape_cast %171 : vector<2xf32> to vector<2x1xf32>
    %173 = vector.broadcast %172 : vector<2x1xf32> to vector<2x4xf32>
    %174 = arith.subf %170, %173 : vector<2x4xf32>
    %175 = math.exp %174 : vector<2x4xf32>
    %cst_85 = arith.constant dense<0.000000e+00> : vector<2xf32>
    %176 = vector.multi_reduction <add>, %175, %cst_85 [1] : vector<2x4xf32> to vector<2xf32>
    %177 = vector.shape_cast %176 : vector<2xf32> to vector<2x1xf32>
    %178 = math.log %177 : vector<2x1xf32>
    %179 = vector.broadcast %178 : vector<2x1xf32> to vector<2x4xf32>
    %180 = arith.subf %174, %179 : vector<2x4xf32>
    %c0_86 = arith.constant 0 : index
    %c0_87 = arith.constant 0 : index
    %181 = vector.load %arg20[%c0_86, %c0_87] : memref<2x4xf32, #tpu.memory_space<vmem>>, vector<2x4xf32>
    tpu.vector_store %arg20[%c0_86, %c0_87], %180 {strides = array<i32>} : memref<2x4xf32, #tpu.memory_space<vmem>>, vector<2x4xf32>,
    %cst_88 = arith.constant dense<0xFF800000> : vector<2xf32>
    %182 = vector.multi_reduction <maximumf>, %158, %cst_88 [1] : vector<2x8xf32> to vector<2xf32>
    %183 = vector.shape_cast %182 : vector<2xf32> to vector<2x1xf32>
    %184 = vector.broadcast %183 : vector<2x1xf32> to vector<2x8xf32>
    %185 = arith.subf %158, %184 : vector<2x8xf32>
    %186 = math.exp %185 : vector<2x8xf32>
    %cst_89 = arith.constant dense<0.000000e+00> : vector<2xf32>
    %187 = vector.multi_reduction <add>, %186, %cst_89 [1] : vector<2x8xf32> to vector<2xf32>
    %188 = vector.shape_cast %187 : vector<2xf32> to vector<2x1xf32>
    %189 = math.log %188 : vector<2x1xf32>
    %190 = vector.broadcast %189 : vector<2x1xf32> to vector<2x8xf32>
    %191 = arith.subf %185, %190 : vector<2x8xf32>
    %c0_90 = arith.constant 0 : index
    %c0_91 = arith.constant 0 : index
    %192 = vector.load %arg21[%c0_90, %c0_91] : memref<2x8xf32, #tpu.memory_space<vmem>>, vector<2x8xf32>
    tpu.vector_store %arg21[%c0_90, %c0_91], %191 {strides = array<i32>} : memref<2x8xf32, #tpu.memory_space<vmem>>, vector<2x8xf32>,
    return
  }
}

</mosaic_0001>

<llo_original>
// kernel: gat_label_relu_forward.1
$region0: #{gat_label_relu_forward.1}
  #allocation0 [shape = 'u32[]', space=smem, size = 0x4, offset = 0x4, fixed_abs, tag = 'smem constant byte address 0x4 - core index']
  #allocation1 [shape = 'u32[144,128]{1,0:T(1,128)}', space=vmem, size = 0x12000, scoped, tag = 'internal scratch']
  #allocation2 [shape = 'f32[2,8]{1,0:T(2,128)}', space=vmem, size = 0x400, scoped, tag = 'scratch operand']
  %s0 = inlined_call_operand.vmem [shape: f32[32,4], index: 0, kind: input, shape index: {}]
  %s1 = inlined_call_operand.vmem [shape: bf16[64,32], index: 1, kind: input, shape index: {}]
  %s2 = inlined_call_operand.vmem [shape: bf16[64,32], index: 2, kind: input, shape index: {}]
  %s3 = inlined_call_operand.vmem [shape: f32[4,8], index: 3, kind: input, shape index: {}]
  %s4 = inlined_call_operand.vmem [shape: f32[1,8], index: 4, kind: input, shape index: {}]
  %s5 = inlined_call_operand.vmem [shape: f32[4,8], index: 5, kind: input, shape index: {}]
  %s6 = inlined_call_operand.vmem [shape: f32[1,8], index: 6, kind: input, shape index: {}]
  %s7 = inlined_call_operand.vmem [shape: f32[8,16], index: 7, kind: input, shape index: {}]
  %s8 = inlined_call_operand.vmem [shape: f32[1,16], index: 8, kind: input, shape index: {}]
  %s9 = inlined_call_operand.vmem [shape: f32[8,16], index: 9, kind: input, shape index: {}]
  %s10 = inlined_call_operand.vmem [shape: f32[1,16], index: 10, kind: input, shape index: {}]
  %s11 = inlined_call_operand.vmem [shape: f32[2,8], index: 11, kind: input, shape index: {}]
  %s12 = inlined_call_operand.vmem [shape: f32[8,16], index: 12, kind: input, shape index: {}]
  %s13 = inlined_call_operand.vmem [shape: f32[1,16], index: 13, kind: input, shape index: {}]
  %s14 = inlined_call_operand.vmem [shape: f32[1,8], index: 14, kind: input, shape index: {}]
  %s15 = inlined_call_operand.vmem [shape: f32[1,8], index: 15, kind: input, shape index: {}]
  %s16 = inlined_call_operand.vmem [shape: f32[8,8], index: 16, kind: input, shape index: {}]
  %s17 = inlined_call_operand.vmem [shape: f32[1,8], index: 17, kind: input, shape index: {}]
  %s18 = inlined_call_operand.vmem [shape: f32[8,4], index: 18, kind: input, shape index: {}]
  %s19 = inlined_call_operand.vmem [shape: f32[1,4], index: 19, kind: input, shape index: {}]
  %s20 = inlined_call_operand.hbm [shape: f32[2,4], index: 20, kind: output, shape index: {0}]
  %s21 = inlined_call_operand.hbm [shape: f32[2,8], index: 21, kind: output, shape index: {1}]
  %22 = xla_tuple %s20, %s21
  %s23 = sld [smem:[#allocation0]]
  $region98: #{gat_label_relu_forward.1} parent=0
    _
  %s25 = ssub.s32 1, %s23
  %s26 = scalar_select 0, %s25, %s23
  $region1: #{gat_label_relu_forward.1} parent=0
    #allocation3 [shape = 'u8[1024]{0}', space=vmem, size = 0x400, scoped, tag = 'output window, operand 0, single buffered']
    #allocation4 [shape = 's32[1]{0}', space=sflag, size = 0x4, scoped, tag = 'scoped memory for gat_label_relu_forward.1']
    #allocation5 [shape = 'u8[1024]{0}', space=vmem, size = 0x400, scoped, tag = 'output window, operand 1, single buffered']
    #allocation6 [shape = 's32[1]{0}', space=sflag, size = 0x4, scoped, tag = 'scoped memory for gat_label_relu_forward.1']
    %27 = vsyncpa [#allocation4], 0
    %28 = vsyncpa [#allocation6], 0
    // Predicated region
    $region2: #{gat_label_relu_forward.1} parent=1 // pred_check
      _
    $region3: #{gat_label_relu_forward.1} parent=1 // pred_check_branch
      %30 = sbr.rel (0) target = $region5
    $region4: #{gat_label_relu_forward.1} parent=1 // pred_region
      _
    $region5: #{gat_label_relu_forward.1} parent=1 // pred_fallthru
      _
    // Predicated region
    $region6: #{gat_label_relu_forward.1} parent=1 // pred_check
      _
    $region7: #{gat_label_relu_forward.1} parent=1 // pred_check_branch
      %32 = sbr.rel (0) target = $region9
    $region8: #{gat_label_relu_forward.1} parent=1 // pred_region
      _
    $region9: #{gat_label_relu_forward.1} parent=1 // pred_fallthru
      _
    // Predicated region
    $region10: #{gat_label_relu_forward.1} parent=1 // pred_check
      _
    $region11: #{gat_label_relu_forward.1} parent=1 // pred_check_branch
      %34 = sbr.rel (0) target = $region13
    $region12: #{gat_label_relu_forward.1} parent=1 // pred_region
      _
    $region13: #{gat_label_relu_forward.1} parent=1 // pred_fallthru
      _
    // Predicated region
    $region14: #{gat_label_relu_forward.1} parent=1 // pred_check
      _
    $region15: #{gat_label_relu_forward.1} parent=1 // pred_check_branch
      %36 = sbr.rel (0) target = $region17
    $region16: #{gat_label_relu_forward.1} parent=1 // pred_region
      _
    $region17: #{gat_label_relu_forward.1} parent=1 // pred_fallthru
      _
    // Predicated region
    $region18: #{gat_label_relu_forward.1} parent=1 // pred_check
      _
    $region19: #{gat_label_relu_forward.1} parent=1 // pred_check_branch
      %38 = sbr.rel (0) target = $region21
    $region20: #{gat_label_relu_forward.1} parent=1 // pred_region
      _
    $region21: #{gat_label_relu_forward.1} parent=1 // pred_fallthru
      _
    // Predicated region
    $region22: #{gat_label_relu_forward.1} parent=1 // pred_check
      _
    $region23: #{gat_label_relu_forward.1} parent=1 // pred_check_branch
      %40 = sbr.rel (0) target = $region25
    $region24: #{gat_label_relu_forward.1} parent=1 // pred_region
      _
    $region25: #{gat_label_relu_forward.1} parent=1 // pred_fallthru
      _
    // Predicated region
    $region26: #{gat_label_relu_forward.1} parent=1 // pred_check
      _
    $region27: #{gat_label_relu_forward.1} parent=1 // pred_check_branch
      %42 = sbr.rel (0) target = $region29
    $region28: #{gat_label_relu_forward.1} parent=1 // pred_region
      _
    $region29: #{gat_label_relu_forward.1} parent=1 // pred_fallthru
      _
    // Predicated region
    $region30: #{gat_label_relu_forward.1} parent=1 // pred_check
      _
    $region31: #{gat_label_relu_forward.1} parent=1 // pred_check_branch
      %44 = sbr.rel (0) target = $region33
    $region32: #{gat_label_relu_forward.1} parent=1 // pred_region
      _
    $region33: #{gat_label_relu_forward.1} parent=1 // pred_fallthru
      _
    // Predicated region
    $region34: #{gat_label_relu_forward.1} parent=1 // pred_check
      _
    $region35: #{gat_label_relu_forward.1} parent=1 // pred_check_branch
      %46 = sbr.rel (0) target = $region37
    $region36: #{gat_label_relu_forward.1} parent=1 // pred_region
      _
    $region37: #{gat_label_relu_forward.1} parent=1 // pred_fallthru
      _
    // Predicated region
    $region38: #{gat_label_relu_forward.1} parent=1 // pred_check
      _
    $region39: #{gat_label_relu_forward.1} parent=1 // pred_check_branch
      %48 = sbr.rel (0) target = $region41
    $region40: #{gat_label_relu_forward.1} parent=1 // pred_region
      _
    $region41: #{gat_label_relu_forward.1} parent=1 // pred_fallthru
      _
    // Predicated region
    $region42: #{gat_label_relu_forward.1} parent=1 // pred_check
      _
    $region43: #{gat_label_relu_forward.1} parent=1 // pred_check_branch
      %50 = sbr.rel (0) target = $region45
    $region44: #{gat_label_relu_forward.1} parent=1 // pred_region
      _
    $region45: #{gat_label_relu_forward.1} parent=1 // pred_fallthru
      _
    // Predicated region
    $region46: #{gat_label_relu_forward.1} parent=1 // pred_check
      _
    $region47: #{gat_label_relu_forward.1} parent=1 // pred_check_branch
      %52 = sbr.rel (0) target = $region49
    $region48: #{gat_label_relu_forward.1} parent=1 // pred_region
      _
    $region49: #{gat_label_relu_forward.1} parent=1 // pred_fallthru
      _
    // Predicated region
    $region50: #{gat_label_relu_forward.1} parent=1 // pred_check
      _
    $region51: #{gat_label_relu_forward.1} parent=1 // pred_check_branch
      %54 = sbr.rel (0) target = $region53
    $region52: #{gat_label_relu_forward.1} parent=1 // pred_region
      _
    $region53: #{gat_label_relu_forward.1} parent=1 // pred_fallthru
      _
    // Predicated region
    $region54: #{gat_label_relu_forward.1} parent=1 // pred_check
      _
    $region55: #{gat_label_relu_forward.1} parent=1 // pred_check_branch
      %56 = sbr.rel (0) target = $region57
    $region56: #{gat_label_relu_forward.1} parent=1 // pred_region
      _
    $region57: #{gat_label_relu_forward.1} parent=1 // pred_fallthru
      _
    // Predicated region
    $region58: #{gat_label_relu_forward.1} parent=1 // pred_check
      _
    $region59: #{gat_label_relu_forward.1} parent=1 // pred_check_branch
      %58 = sbr.rel (0) target = $region61
    $region60: #{gat_label_relu_forward.1} parent=1 // pred_region
      _
    $region61: #{gat_label_relu_forward.1} parent=1 // pred_fallthru
      _
    // Predicated region
    $region62: #{gat_label_relu_forward.1} parent=1 // pred_check
      _
    $region63: #{gat_label_relu_forward.1} parent=1 // pred_check_branch
      %60 = sbr.rel (0) target = $region65
    $region64: #{gat_label_relu_forward.1} parent=1 // pred_region
      _
    $region65: #{gat_label_relu_forward.1} parent=1 // pred_fallthru
      _
    // Predicated region
    $region66: #{gat_label_relu_forward.1} parent=1 // pred_check
      _
    $region67: #{gat_label_relu_forward.1} parent=1 // pred_check_branch
      %62 = sbr.rel (0) target = $region69
    $region68: #{gat_label_relu_forward.1} parent=1 // pred_region
      _
    $region69: #{gat_label_relu_forward.1} parent=1 // pred_fallthru
      _
    // Predicated region
    $region70: #{gat_label_relu_forward.1} parent=1 // pred_check
      _
    $region71: #{gat_label_relu_forward.1} parent=1 // pred_check_branch
      %64 = sbr.rel (0) target = $region73
    $region72: #{gat_label_relu_forward.1} parent=1 // pred_region
      _
    $region73: #{gat_label_relu_forward.1} parent=1 // pred_fallthru
      _
    // Predicated region
    $region74: #{gat_label_relu_forward.1} parent=1 // pred_check
      _
    $region75: #{gat_label_relu_forward.1} parent=1 // pred_check_branch
      %66 = sbr.rel (0) target = $region77
    $region76: #{gat_label_relu_forward.1} parent=1 // pred_region
      _
    $region77: #{gat_label_relu_forward.1} parent=1 // pred_fallthru
      _
    // Predicated region
    $region78: #{gat_label_relu_forward.1} parent=1 // pred_check
      _
    $region79: #{gat_label_relu_forward.1} parent=1 // pred_check_branch
      %68 = sbr.rel (0) target = $region81
    $region80: #{gat_label_relu_forward.1} parent=1 // pred_region
      _
    $region81: #{gat_label_relu_forward.1} parent=1 // pred_fallthru
      _
    %v69 = vld [vmem:[%s0] sm:$0xff]
    %v70 = vld [vmem:[%s0 + $0x8] sm:$0xff]
    %v71 = vld [vmem:[%s0 + $0x10] sm:$0xff]
    %v72 = vld [vmem:[%s0 + $0x18] sm:$0xff]
    %v73 = vld [vmem:[%s1] sm:$0xf]
    %v74 = vld [vmem:[%s1 + $0x4] sm:$0xf]
    %v75 = vld [vmem:[%s1 + $0x8] sm:$0xf]
    %v76 = vld [vmem:[%s1 + $0xc] sm:$0xf]
    %v77 = vld [vmem:[%s1 + $0x10] sm:$0xf]
    %v78 = vld [vmem:[%s1 + $0x14] sm:$0xf]
    %v79 = vld [vmem:[%s1 + $0x18] sm:$0xf]
    %v80 = vld [vmem:[%s1 + $0x1c] sm:$0xf]
    %v81 = vunpack.c.l.bf16 %v73
    %v82 = vunpack.c.l.bf16 %v74
    %v83 = vunpack.c.l.bf16 %v75
    %v84 = vunpack.c.l.bf16 %v76
    %v85 = vunpack.c.l.bf16 %v77
    %v86 = vunpack.c.l.bf16 %v78
    %v87 = vunpack.c.l.bf16 %v79
    %v88 = vunpack.c.l.bf16 %v80
    %v89 = vld [vmem:[%s2] sm:$0xf]
    %v90 = vld [vmem:[%s2 + $0x4] sm:$0xf]
    %v91 = vld [vmem:[%s2 + $0x8] sm:$0xf]
    %v92 = vld [vmem:[%s2 + $0xc] sm:$0xf]
    %v93 = vld [vmem:[%s2 + $0x10] sm:$0xf]
    %v94 = vld [vmem:[%s2 + $0x14] sm:$0xf]
    %v95 = vld [vmem:[%s2 + $0x18] sm:$0xf]
    %v96 = vld [vmem:[%s2 + $0x1c] sm:$0xf]
    %v97 = vunpack.c.l.bf16 %v89
    %v98 = vunpack.c.l.bf16 %v90
    %v99 = vunpack.c.l.bf16 %v91
    %v100 = vunpack.c.l.bf16 %v92
    %v101 = vunpack.c.l.bf16 %v93
    %v102 = vunpack.c.l.bf16 %v94
    %v103 = vunpack.c.l.bf16 %v95
    %v104 = vunpack.c.l.bf16 %v96
    %v105 = vld [vmem:[%s3] sm:$0xf]
    %v106 = vld [vmem:[%s4] sm:$0x1]
    %v108 = vlaneseq
    %v109 = vshrl.u32 %v108, 7
    %v110 = vsub.s32 0, %v109
    %v111 = vrot.slane %v106, %v110
    %vm113 = vcmask 31744
    %v115 = vsel %vm113, %v69, 0
    %v118 = vsel %vm113, %v70, 0
    %v121 = vsel %vm113, %v71, 0
    %v124 = vsel %vm113, %v72, 0
    %vm126 = vcmask 1043456
    %v128 = vsel %vm126, %v105, 0
    %130 = vmatprep.subr.mxu0 0.0
    %131 = vmatpush1.msra.mxu0 0.0
    %132 = vmatprep.subr.mxu0 0.0
    %133 = vmatpush1.msra.mxu0 0.0
    %134 = vmatprep.subr.mxu0 0.0
    %135 = vmatpush1.msra.mxu0 0.0
    %136 = vmatprep.subr.mxu0 0.0
    %137 = vmatpush1.msra.mxu0 0.0
    %138 = vmatprep.subr.mxu0 0.0
    %139 = vmatpush1.msra.mxu0 0.0
    %140 = vmatprep.subr.mxu0 0.0
    %141 = vmatpush1.msra.mxu0 0.0
    %142 = vmatprep.subr.mxu0 0.0
    %143 = vmatpush1.msra.mxu0 0.0
    %144 = vmatprep.subr.mxu0 0.0
    %145 = vmatpush1.msra.mxu0 0.0
    %146 = vmatprep.subr.mxu0 0.0
    %147 = vmatpush1.msra.mxu0 0.0
    %148 = vmatprep.subr.mxu0 0.0
    %149 = vmatpush1.msra.mxu0 0.0
    %150 = vmatprep.subr.mxu0 0.0
    %151 = vmatpush1.msra.mxu0 0.0
    %152 = vmatprep.subr.mxu0 0.0
    %153 = vmatpush1.msra.mxu0 0.0
    %154 = vmatprep.subr.mxu0 0.0
    %155 = vmatpush1.msra.mxu0 0.0
    %156 = vmatprep.subr.mxu0 0.0
    %157 = vmatpush1.msra.mxu0 0.0
    %158 = vmatprep.subr.mxu0 0.0
    %159 = vmatpush1.msra.mxu0 0.0
    %160 = vmatprep.subr.mxu0 0.0
    %161 = vmatpush1.msra.mxu0 %v128
    %162 = vmatprep.subr.mxu0 0.0
    %163 = vmatpush2.msra.mxu0 0.0
    %164 = vmatprep.subr.mxu0 0.0
    %165 = vmatpush2.msra.mxu0 0.0
    %166 = vmatprep.subr.mxu0 0.0
    %167 = vmatpush2.msra.mxu0 0.0
    %168 = vmatprep.subr.mxu0 0.0
    %169 = vmatpush2.msra.mxu0 0.0
    %170 = vmatprep.subr.mxu0 0.0
    %171 = vmatpush2.msra.mxu0 0.0
    %172 = vmatprep.subr.mxu0 0.0
    %173 = vmatpush2.msra.mxu0 0.0
    %174 = vmatprep.subr.mxu0 0.0
    %175 = vmatpush2.msra.mxu0 0.0
    %176 = vmatprep.subr.mxu0 0.0
    %177 = vmatpush2.msra.mxu0 0.0
    %178 = vmatprep.subr.mxu0 0.0
    %179 = vmatpush2.msra.mxu0 0.0
    %180 = vmatprep.subr.mxu0 0.0
    %181 = vmatpush2.msra.mxu0 0.0
    %182 = vmatprep.subr.mxu0 0.0
    %183 = vmatpush2.msra.mxu0 0.0
    %184 = vmatprep.subr.mxu0 0.0
    %185 = vmatpush2.msra.mxu0 0.0
    %186 = vmatprep.subr.mxu0 0.0
    %187 = vmatpush2.msra.mxu0 0.0
    %188 = vmatprep.subr.mxu0 0.0
    %189 = vmatpush2.msra.mxu0 0.0
    %190 = vmatprep.subr.mxu0 0.0
    %191 = vmatpush2.msra.mxu0 0.0
    %192 = vmatprep.subr.mxu0 0.0
    %193 = vmatpush2.msra.mxu0 0.0
    %194 = vmatprep.mubr.f32.mxu0 0.0
    %195 = vmatmul.mubr.f32.gmra.mxu0 %v115
    %v196 = vpop.f32.mrf.mxu0
    %v197 = vadd.f32 %v111, %v196
    %v198 = vpop.f32.mrf.mxu0
    %199 = vmatprep.mubr.f32.mxu0 0.0
    %200 = vmatmul.mubr.f32.gmra.mxu0 %v118
    %v201 = vpop.f32.mrf.mxu0
    %v202 = vadd.f32 %v111, %v201
    %v203 = vpop.f32.mrf.mxu0
    %204 = vmatprep.mubr.f32.mxu0 0.0
    %205 = vmatmul.mubr.f32.gmra.mxu0 %v121
    %v206 = vpop.f32.mrf.mxu0
    %v207 = vadd.f32 %v111, %v206
    %v208 = vpop.f32.mrf.mxu0
    %209 = vmatprep.mubr.f32.mxu0 0.0
    %210 = vmatmul.mubr.f32.gmra.mxu0 %v124
    %v211 = vpop.f32.mrf.mxu0
    %v212 = vadd.f32 %v111, %v211
    %v213 = vpop.f32.mrf.mxu0
    %214 = vdwg.mxu0
    %v215 = vmax.f32 %v197, 0.0
    %v216 = vmax.f32 %v202, 0.0
    %v217 = vmax.f32 %v207, 0.0
    %v218 = vmax.f32 %v212, 0.0
    %vm219 = vcmask 261120
    %v221 = vsel %vm219, %v81, 0
    %v224 = vsel %vm219, %v82, 0
    %v227 = vsel %vm219, %v83, 0
    %v230 = vsel %vm219, %v84, 0
    %v233 = vsel %vm219, %v85, 0
    %v236 = vsel %vm219, %v86, 0
    %v239 = vsel %vm219, %v87, 0
    %v242 = vsel %vm219, %v88, 0
    %244 = vmatprep.subr.mxu0 0.0
    %245 = vmatpush1.msra.mxu0 0.0
    %246 = vmatprep.subr.mxu0 0.0
    %247 = vmatpush1.msra.mxu0 0.0
    %248 = vmatprep.subr.mxu0 0.0
    %249 = vmatpush1.msra.mxu0 0.0
    %250 = vmatprep.subr.mxu0 0.0
    %251 = vmatpush1.msra.mxu0 0.0
    %252 = vmatprep.subr.mxu0 0.0
    %253 = vmatpush1.msra.mxu0 0.0
    %254 = vmatprep.subr.mxu0 0.0
    %255 = vmatpush1.msra.mxu0 0.0
    %256 = vmatprep.subr.mxu0 0.0
    %257 = vmatpush1.msra.mxu0 0.0
    %258 = vmatprep.subr.mxu0 0.0
    %259 = vmatpush1.msra.mxu0 0.0
    %260 = vmatprep.subr.mxu0 0.0
    %261 = vmatpush1.msra.mxu0 0.0
    %262 = vmatprep.subr.mxu0 0.0
    %263 = vmatpush1.msra.mxu0 0.0
    %264 = vmatprep.subr.mxu0 0.0
    %265 = vmatpush1.msra.mxu0 0.0
    %266 = vmatprep.subr.mxu0 0.0
    %267 = vmatpush1.msra.mxu0 0.0
    %268 = vmatprep.subr.mxu0 0.0
    %269 = vmatpush1.msra.mxu0 %v72
    %270 = vmatprep.subr.mxu0 0.0
    %271 = vmatpush1.msra.mxu0 %v71
    %272 = vmatprep.subr.mxu0 0.0
    %273 = vmatpush1.msra.mxu0 %v70
    %274 = vmatprep.subr.mxu0 0.0
    %275 = vmatpush1.msra.mxu0 %v69
    %276 = vmatprep.subr.mxu0 0.0
    %277 = vmatpush2.msra.mxu0 0.0
    %278 = vmatprep.subr.mxu0 0.0
    %279 = vmatpush2.msra.mxu0 0.0
    %280 = vmatprep.subr.mxu0 0.0
    %281 = vmatpush2.msra.mxu0 0.0
    %282 = vmatprep.subr.mxu0 0.0
    %283 = vmatpush2.msra.mxu0 0.0
    %284 = vmatprep.subr.mxu0 0.0
    %285 = vmatpush2.msra.mxu0 0.0
    %286 = vmatprep.subr.mxu0 0.0
    %287 = vmatpush2.msra.mxu0 0.0
    %288 = vmatprep.subr.mxu0 0.0
    %289 = vmatpush2.msra.mxu0 0.0
    %290 = vmatprep.subr.mxu0 0.0
    %291 = vmatpush2.msra.mxu0 0.0
    %292 = vmatprep.subr.mxu0 0.0
    %293 = vmatpush2.msra.mxu0 0.0
    %294 = vmatprep.subr.mxu0 0.0
    %295 = vmatpush2.msra.mxu0 0.0
    %296 = vmatprep.subr.mxu0 0.0
    %297 = vmatpush2.msra.mxu0 0.0
    %298 = vmatprep.subr.mxu0 0.0
    %299 = vmatpush2.msra.mxu0 0.0
    %300 = vmatprep.subr.mxu0 0.0
    %301 = vmatpush2.msra.mxu0 0.0
    %302 = vmatprep.subr.mxu0 0.0
    %303 = vmatpush2.msra.mxu0 0.0
    %304 = vmatprep.subr.mxu0 0.0
    %305 = vmatpush2.msra.mxu0 0.0
    %306 = vmatprep.subr.mxu0 0.0
    %307 = vmatpush2.msra.mxu0 0.0
    %308 = vmatprep.mubr.f32.mxu0 0.0
    %309 = vmatmul.mubr.f32.gmra.mxu0 %v221
    %v310 = vpop.f32.mrf.mxu0
    %v311 = vadd.f32 0.0, %v310
    %v312 = vpop.f32.mrf.mxu0
    %313 = vmatprep.mubr.f32.mxu0 0.0
    %314 = vmatmul.mubr.f32.gmra.mxu0 %v224
    %v315 = vpop.f32.mrf.mxu0
    %v316 = vadd.f32 0.0, %v315
    %v317 = vpop.f32.mrf.mxu0
    %318 = vmatprep.mubr.f32.mxu0 0.0
    %319 = vmatmul.mubr.f32.gmra.mxu0 %v227
    %v320 = vpop.f32.mrf.mxu0
    %v321 = vadd.f32 0.0, %v320
    %v322 = vpop.f32.mrf.mxu0
    %323 = vmatprep.mubr.f32.mxu0 0.0
    %324 = vmatmul.mubr.f32.gmra.mxu0 %v230
    %v325 = vpop.f32.mrf.mxu0
    %v326 = vadd.f32 0.0, %v325
    %v327 = vpop.f32.mrf.mxu0
    %328 = vmatprep.mubr.f32.mxu0 0.0
    %329 = vmatmul.mubr.f32.gmra.mxu0 %v233
    %v330 = vpop.f32.mrf.mxu0
    %v331 = vadd.f32 0.0, %v330
    %v332 = vpop.f32.mrf.mxu0
    %333 = vmatprep.mubr.f32.mxu0 0.0
    %334 = vmatmul.mubr.f32.gmra.mxu0 %v236
    %v335 = vpop.f32.mrf.mxu0
    %v336 = vadd.f32 0.0, %v335
    %v337 = vpop.f32.mrf.mxu0
    %338 = vmatprep.mubr.f32.mxu0 0.0
    %339 = vmatmul.mubr.f32.gmra.mxu0 %v239
    %v340 = vpop.f32.mrf.mxu0
    %v341 = vadd.f32 0.0, %v340
    %v342 = vpop.f32.mrf.mxu0
    %343 = vmatprep.mubr.f32.mxu0 0.0
    %344 = vmatmul.mubr.f32.gmra.mxu0 %v242
    %v345 = vpop.f32.mrf.mxu0
    %v346 = vadd.f32 0.0, %v345
    %v347 = vpop.f32.mrf.mxu0
    %348 = vdwg.mxu0
    %v350 = vsel %vm219, %v97, 0
    %v353 = vsel %vm219, %v98, 0
    %v356 = vsel %vm219, %v99, 0
    %v359 = vsel %vm219, %v100, 0
    %v362 = vsel %vm219, %v101, 0
    %v365 = vsel %vm219, %v102, 0
    %v368 = vsel %vm219, %v103, 0
    %v371 = vsel %vm219, %v104, 0
    %373 = vmatprep.subr.mxu0 0.0
    %374 = vmatpush1.msra.mxu0 0.0
    %375 = vmatprep.subr.mxu0 0.0
    %376 = vmatpush1.msra.mxu0 0.0
    %377 = vmatprep.subr.mxu0 0.0
    %378 = vmatpush1.msra.mxu0 0.0
    %379 = vmatprep.subr.mxu0 0.0
    %380 = vmatpush1.msra.mxu0 0.0
    %381 = vmatprep.subr.mxu0 0.0
    %382 = vmatpush1.msra.mxu0 0.0
    %383 = vmatprep.subr.mxu0 0.0
    %384 = vmatpush1.msra.mxu0 0.0
    %385 = vmatprep.subr.mxu0 0.0
    %386 = vmatpush1.msra.mxu0 0.0
    %387 = vmatprep.subr.mxu0 0.0
    %388 = vmatpush1.msra.mxu0 0.0
    %389 = vmatprep.subr.mxu0 0.0
    %390 = vmatpush1.msra.mxu0 0.0
    %391 = vmatprep.subr.mxu0 0.0
    %392 = vmatpush1.msra.mxu0 0.0
    %393 = vmatprep.subr.mxu0 0.0
    %394 = vmatpush1.msra.mxu0 0.0
    %395 = vmatprep.subr.mxu0 0.0
    %396 = vmatpush1.msra.mxu0 0.0
    %397 = vmatprep.subr.mxu0 0.0
    %398 = vmatpush1.msra.mxu0 %v72
    %399 = vmatprep.subr.mxu0 0.0
    %400 = vmatpush1.msra.mxu0 %v71
    %401 = vmatprep.subr.mxu0 0.0
    %402 = vmatpush1.msra.mxu0 %v70
    %403 = vmatprep.subr.mxu0 0.0
    %404 = vmatpush1.msra.mxu0 %v69
    %405 = vmatprep.subr.mxu0 0.0
    %406 = vmatpush2.msra.mxu0 0.0
    %407 = vmatprep.subr.mxu0 0.0
    %408 = vmatpush2.msra.mxu0 0.0
    %409 = vmatprep.subr.mxu0 0.0
    %410 = vmatpush2.msra.mxu0 0.0
    %411 = vmatprep.subr.mxu0 0.0
    %412 = vmatpush2.msra.mxu0 0.0
    %413 = vmatprep.subr.mxu0 0.0
    %414 = vmatpush2.msra.mxu0 0.0
    %415 = vmatprep.subr.mxu0 0.0
    %416 = vmatpush2.msra.mxu0 0.0
    %417 = vmatprep.subr.mxu0 0.0
    %418 = vmatpush2.msra.mxu0 0.0
    %419 = vmatprep.subr.mxu0 0.0
    %420 = vmatpush2.msra.mxu0 0.0
    %421 = vmatprep.subr.mxu0 0.0
    %422 = vmatpush2.msra.mxu0 0.0
    %423 = vmatprep.subr.mxu0 0.0
    %424 = vmatpush2.msra.mxu0 0.0
    %425 = vmatprep.subr.mxu0 0.0
    %426 = vmatpush2.msra.mxu0 0.0
    %427 = vmatprep.subr.mxu0 0.0
    %428 = vmatpush2.msra.mxu0 0.0
    %429 = vmatprep.subr.mxu0 0.0
    %430 = vmatpush2.msra.mxu0 0.0
    %431 = vmatprep.subr.mxu0 0.0
    %432 = vmatpush2.msra.mxu0 0.0
    %433 = vmatprep.subr.mxu0 0.0
    %434 = vmatpush2.msra.mxu0 0.0
    %435 = vmatprep.subr.mxu0 0.0
    %436 = vmatpush2.msra.mxu0 0.0
    %437 = vmatprep.mubr.f32.mxu0 0.0
    %438 = vmatmul.mubr.f32.gmra.mxu0 %v350
    %v439 = vpop.f32.mrf.mxu0
    %v440 = vadd.f32 0.0, %v439
    %v441 = vpop.f32.mrf.mxu0
    %442 = vmatprep.mubr.f32.mxu0 0.0
    %443 = vmatmul.mubr.f32.gmra.mxu0 %v353
    %v444 = vpop.f32.mrf.mxu0
    %v445 = vadd.f32 0.0, %v444
    %v446 = vpop.f32.mrf.mxu0
    %447 = vmatprep.mubr.f32.mxu0 0.0
    %448 = vmatmul.mubr.f32.gmra.mxu0 %v356
    %v449 = vpop.f32.mrf.mxu0
    %v450 = vadd.f32 0.0, %v449
    %v451 = vpop.f32.mrf.mxu0
    %452 = vmatprep.mubr.f32.mxu0 0.0
    %453 = vmatmul.mubr.f32.gmra.mxu0 %v359
    %v454 = vpop.f32.mrf.mxu0
    %v455 = vadd.f32 0.0, %v454
    %v456 = vpop.f32.mrf.mxu0
    %457 = vmatprep.mubr.f32.mxu0 0.0
    %458 = vmatmul.mubr.f32.gmra.mxu0 %v362
    %v459 = vpop.f32.mrf.mxu0
    %v460 = vadd.f32 0.0, %v459
    %v461 = vpop.f32.mrf.mxu0
    %462 = vmatprep.mubr.f32.mxu0 0.0
    %463 = vmatmul.mubr.f32.gmra.mxu0 %v365
    %v464 = vpop.f32.mrf.mxu0
    %v465 = vadd.f32 0.0, %v464
    %v466 = vpop.f32.mrf.mxu0
    %467 = vmatprep.mubr.f32.mxu0 0.0
    %468 = vmatmul.mubr.f32.gmra.mxu0 %v368
    %v469 = vpop.f32.mrf.mxu0
    %v470 = vadd.f32 0.0, %v469
    %v471 = vpop.f32.mrf.mxu0
    %472 = vmatprep.mubr.f32.mxu0 0.0
    %473 = vmatmul.mubr.f32.gmra.mxu0 %v371
    %v474 = vpop.f32.mrf.mxu0
    %v475 = vadd.f32 0.0, %v474
    %v476 = vpop.f32.mrf.mxu0
    %477 = vdwg.mxu0
    %v478 = vmul.f32 %v311, %v440
    %v479 = vmul.f32 %v316, %v445
    %v480 = vmul.f32 %v321, %v450
    %v481 = vmul.f32 %v326, %v455
    %v482 = vmul.f32 %v331, %v460
    %v483 = vmul.f32 %v336, %v465
    %v484 = vmul.f32 %v341, %v470
    %v485 = vmul.f32 %v346, %v475
    %v486 = vld [vmem:[%s5] sm:$0xf]
    %v487 = vld [vmem:[%s6] sm:$0x1]
    %v489 = vlaneseq
    %v490 = vshrl.u32 %v489, 7
    %v491 = vsub.s32 0, %v490
    %v492 = vrot.slane %v487, %v491
    %v495 = vsel %vm113, %v478, 0
    %v498 = vsel %vm113, %v479, 0
    %v501 = vsel %vm113, %v480, 0
    %v504 = vsel %vm113, %v481, 0
    %v507 = vsel %vm113, %v482, 0
    %v510 = vsel %vm113, %v483, 0
    %v513 = vsel %vm113, %v484, 0
    %v516 = vsel %vm113, %v485, 0
    %v519 = vsel %vm126, %v486, 0
    %521 = vmatprep.subr.mxu0 0.0
    %522 = vmatpush1.msra.mxu0 0.0
    %523 = vmatprep.subr.mxu0 0.0
    %524 = vmatpush1.msra.mxu0 0.0
    %525 = vmatprep.subr.mxu0 0.0
    %526 = vmatpush1.msra.mxu0 0.0
    %527 = vmatprep.subr.mxu0 0.0
    %528 = vmatpush1.msra.mxu0 0.0
    %529 = vmatprep.subr.mxu0 0.0
    %530 = vmatpush1.msra.mxu0 0.0
    %531 = vmatprep.subr.mxu0 0.0
    %532 = vmatpush1.msra.mxu0 0.0
    %533 = vmatprep.subr.mxu0 0.0
    %534 = vmatpush1.msra.mxu0 0.0
    %535 = vmatprep.subr.mxu0 0.0
    %536 = vmatpush1.msra.mxu0 0.0
    %537 = vmatprep.subr.mxu0 0.0
    %538 = vmatpush1.msra.mxu0 0.0
    %539 = vmatprep.subr.mxu0 0.0
    %540 = vmatpush1.msra.mxu0 0.0
    %541 = vmatprep.subr.mxu0 0.0
    %542 = vmatpush1.msra.mxu0 0.0
    %543 = vmatprep.subr.mxu0 0.0
    %544 = vmatpush1.msra.mxu0 0.0
    %545 = vmatprep.subr.mxu0 0.0
    %546 = vmatpush1.msra.mxu0 0.0
    %547 = vmatprep.subr.mxu0 0.0
    %548 = vmatpush1.msra.mxu0 0.0
    %549 = vmatprep.subr.mxu0 0.0
    %550 = vmatpush1.msra.mxu0 0.0
    %551 = vmatprep.subr.mxu0 0.0
    %552 = vmatpush1.msra.mxu0 %v519
    %553 = vmatprep.subr.mxu0 0.0
    %554 = vmatpush2.msra.mxu0 0.0
    %555 = vmatprep.subr.mxu0 0.0
    %556 = vmatpush2.msra.mxu0 0.0
    %557 = vmatprep.subr.mxu0 0.0
    %558 = vmatpush2.msra.mxu0 0.0
    %559 = vmatprep.subr.mxu0 0.0
    %560 = vmatpush2.msra.mxu0 0.0
    %561 = vmatprep.subr.mxu0 0.0
    %562 = vmatpush2.msra.mxu0 0.0
    %563 = vmatprep.subr.mxu0 0.0
    %564 = vmatpush2.msra.mxu0 0.0
    %565 = vmatprep.subr.mxu0 0.0
    %566 = vmatpush2.msra.mxu0 0.0
    %567 = vmatprep.subr.mxu0 0.0
    %568 = vmatpush2.msra.mxu0 0.0
    %569 = vmatprep.subr.mxu0 0.0
    %570 = vmatpush2.msra.mxu0 0.0
    %571 = vmatprep.subr.mxu0 0.0
    %572 = vmatpush2.msra.mxu0 0.0
    %573 = vmatprep.subr.mxu0 0.0
    %574 = vmatpush2.msra.mxu0 0.0
    %575 = vmatprep.subr.mxu0 0.0
    %576 = vmatpush2.msra.mxu0 0.0
    %577 = vmatprep.subr.mxu0 0.0
    %578 = vmatpush2.msra.mxu0 0.0
    %579 = vmatprep.subr.mxu0 0.0
    %580 = vmatpush2.msra.mxu0 0.0
    %581 = vmatprep.subr.mxu0 0.0
    %582 = vmatpush2.msra.mxu0 0.0
    %583 = vmatprep.subr.mxu0 0.0
    %584 = vmatpush2.msra.mxu0 0.0
    %585 = vmatprep.mubr.f32.mxu0 0.0
    %586 = vmatmul.mubr.f32.gmra.mxu0 %v495
    %v587 = vpop.f32.mrf.mxu0
    %v588 = vadd.f32 %v492, %v587
    %v589 = vpop.f32.mrf.mxu0
    %590 = vmatprep.mubr.f32.mxu0 0.0
    %591 = vmatmul.mubr.f32.gmra.mxu0 %v498
    %v592 = vpop.f32.mrf.mxu0
    %v593 = vadd.f32 %v492, %v592
    %v594 = vpop.f32.mrf.mxu0
    %595 = vmatprep.mubr.f32.mxu0 0.0
    %596 = vmatmul.mubr.f32.gmra.mxu0 %v501
    %v597 = vpop.f32.mrf.mxu0
    %v598 = vadd.f32 %v492, %v597
    %v599 = vpop.f32.mrf.mxu0
    %600 = vmatprep.mubr.f32.mxu0 0.0
    %601 = vmatmul.mubr.f32.gmra.mxu0 %v504
    %v602 = vpop.f32.mrf.mxu0
    %v603 = vadd.f32 %v492, %v602
    %v604 = vpop.f32.mrf.mxu0
    %605 = vmatprep.mubr.f32.mxu0 0.0
    %606 = vmatmul.mubr.f32.gmra.mxu0 %v507
    %v607 = vpop.f32.mrf.mxu0
    %v608 = vadd.f32 %v492, %v607
    %v609 = vpop.f32.mrf.mxu0
    %610 = vmatprep.mubr.f32.mxu0 0.0
    %611 = vmatmul.mubr.f32.gmra.mxu0 %v510
    %v612 = vpop.f32.mrf.mxu0
    %v613 = vadd.f32 %v492, %v612
    %v614 = vpop.f32.mrf.mxu0
    %615 = vmatprep.mubr.f32.mxu0 0.0
    %616 = vmatmul.mubr.f32.gmra.mxu0 %v513
    %v617 = vpop.f32.mrf.mxu0
    %v618 = vadd.f32 %v492, %v617
    %v619 = vpop.f32.mrf.mxu0
    %620 = vmatprep.mubr.f32.mxu0 0.0
    %621 = vmatmul.mubr.f32.gmra.mxu0 %v516
    %v622 = vpop.f32.mrf.mxu0
    %v623 = vadd.f32 %v492, %v622
    %v624 = vpop.f32.mrf.mxu0
    %625 = vdwg.mxu0
    %v626 = vmax.f32 %v588, 0.0
    %v627 = vmax.f32 %v593, 0.0
    %v628 = vmax.f32 %v598, 0.0
    %v629 = vmax.f32 %v603, 0.0
    %v630 = vmax.f32 %v608, 0.0
    %v631 = vmax.f32 %v613, 0.0
    %v632 = vmax.f32 %v618, 0.0
    %v633 = vmax.f32 %v623, 0.0
    %v634 = vld [vmem:[%s12] sm:$0xff]
    %vm635 = vcmask 64512
    %v637 = vsel %vm635, %v626, 0
    %v640 = vsel %vm635, %v627, 0
    %v643 = vsel %vm635, %v628, 0
    %v646 = vsel %vm635, %v629, 0
    %v649 = vsel %vm635, %v630, 0
    %v652 = vsel %vm635, %v631, 0
    %v655 = vsel %vm635, %v632, 0
    %v658 = vsel %vm635, %v633, 0
    %660 = vmatprep.subr.mxu0 0.0
    %661 = vmatpush1.msra.mxu0 0.0
    %662 = vmatprep.subr.mxu0 0.0
    %663 = vmatpush1.msra.mxu0 0.0
    %664 = vmatprep.subr.mxu0 0.0
    %665 = vmatpush1.msra.mxu0 0.0
    %666 = vmatprep.subr.mxu0 0.0
    %667 = vmatpush1.msra.mxu0 0.0
    %668 = vmatprep.subr.mxu0 0.0
    %669 = vmatpush1.msra.mxu0 0.0
    %670 = vmatprep.subr.mxu0 0.0
    %671 = vmatpush1.msra.mxu0 0.0
    %672 = vmatprep.subr.mxu0 0.0
    %673 = vmatpush1.msra.mxu0 0.0
    %674 = vmatprep.subr.mxu0 0.0
    %675 = vmatpush1.msra.mxu0 0.0
    %676 = vmatprep.subr.mxu0 0.0
    %677 = vmatpush1.msra.mxu0 0.0
    %678 = vmatprep.subr.mxu0 0.0
    %679 = vmatpush1.msra.mxu0 0.0
    %680 = vmatprep.subr.mxu0 0.0
    %681 = vmatpush1.msra.mxu0 0.0
    %682 = vmatprep.subr.mxu0 0.0
    %683 = vmatpush1.msra.mxu0 0.0
    %684 = vmatprep.subr.mxu0 0.0
    %685 = vmatpush1.msra.mxu0 0.0
    %686 = vmatprep.subr.mxu0 0.0
    %687 = vmatpush1.msra.mxu0 0.0
    %688 = vmatprep.subr.mxu0 0.0
    %689 = vmatpush1.msra.mxu0 0.0
    %690 = vmatprep.subr.mxu0 0.0
    %691 = vmatpush1.msra.mxu0 %v634
    %692 = vmatprep.subr.mxu0 0.0
    %693 = vmatpush2.msra.mxu0 0.0
    %694 = vmatprep.subr.mxu0 0.0
    %695 = vmatpush2.msra.mxu0 0.0
    %696 = vmatprep.subr.mxu0 0.0
    %697 = vmatpush2.msra.mxu0 0.0
    %698 = vmatprep.subr.mxu0 0.0
    %699 = vmatpush2.msra.mxu0 0.0
    %700 = vmatprep.subr.mxu0 0.0
    %701 = vmatpush2.msra.mxu0 0.0
    %702 = vmatprep.subr.mxu0 0.0
    %703 = vmatpush2.msra.mxu0 0.0
    %704 = vmatprep.subr.mxu0 0.0
    %705 = vmatpush2.msra.mxu0 0.0
    %706 = vmatprep.subr.mxu0 0.0
    %707 = vmatpush2.msra.mxu0 0.0
    %708 = vmatprep.subr.mxu0 0.0
    %709 = vmatpush2.msra.mxu0 0.0
    %710 = vmatprep.subr.mxu0 0.0
    %711 = vmatpush2.msra.mxu0 0.0
    %712 = vmatprep.subr.mxu0 0.0
    %713 = vmatpush2.msra.mxu0 0.0
    %714 = vmatprep.subr.mxu0 0.0
    %715 = vmatpush2.msra.mxu0 0.0
    %716 = vmatprep.subr.mxu0 0.0
    %717 = vmatpush2.msra.mxu0 0.0
    %718 = vmatprep.subr.mxu0 0.0
    %719 = vmatpush2.msra.mxu0 0.0
    %720 = vmatprep.subr.mxu0 0.0
    %721 = vmatpush2.msra.mxu0 0.0
    %722 = vmatprep.subr.mxu0 0.0
    %723 = vmatpush2.msra.mxu0 0.0
    %724 = vmatprep.mubr.f32.mxu0 0.0
    %725 = vmatmul.mubr.f32.gmra.mxu0 %v637
    %v726 = vpop.f32.mrf.mxu0
    %v727 = vadd.f32 0.0, %v726
    %v728 = vpop.f32.mrf.mxu0
    %729 = vmatprep.mubr.f32.mxu0 0.0
    %730 = vmatmul.mubr.f32.gmra.mxu0 %v640
    %v731 = vpop.f32.mrf.mxu0
    %v732 = vadd.f32 0.0, %v731
    %v733 = vpop.f32.mrf.mxu0
    %734 = vmatprep.mubr.f32.mxu0 0.0
    %735 = vmatmul.mubr.f32.gmra.mxu0 %v643
    %v736 = vpop.f32.mrf.mxu0
    %v737 = vadd.f32 0.0, %v736
    %v738 = vpop.f32.mrf.mxu0
    %739 = vmatprep.mubr.f32.mxu0 0.0
    %740 = vmatmul.mubr.f32.gmra.mxu0 %v646
    %v741 = vpop.f32.mrf.mxu0
    %v742 = vadd.f32 0.0, %v741
    %v743 = vpop.f32.mrf.mxu0
    %744 = vmatprep.mubr.f32.mxu0 0.0
    %745 = vmatmul.mubr.f32.gmra.mxu0 %v649
    %v746 = vpop.f32.mrf.mxu0
    %v747 = vadd.f32 0.0, %v746
    %v748 = vpop.f32.mrf.mxu0
    %749 = vmatprep.mubr.f32.mxu0 0.0
    %750 = vmatmul.mubr.f32.gmra.mxu0 %v652
    %v751 = vpop.f32.mrf.mxu0
    %v752 = vadd.f32 0.0, %v751
    %v753 = vpop.f32.mrf.mxu0
    %754 = vmatprep.mubr.f32.mxu0 0.0
    %755 = vmatmul.mubr.f32.gmra.mxu0 %v655
    %v756 = vpop.f32.mrf.mxu0
    %v757 = vadd.f32 0.0, %v756
    %v758 = vpop.f32.mrf.mxu0
    %759 = vmatprep.mubr.f32.mxu0 0.0
    %760 = vmatmul.mubr.f32.gmra.mxu0 %v658
    %v761 = vpop.f32.mrf.mxu0
    %v762 = vadd.f32 0.0, %v761
    %v763 = vpop.f32.mrf.mxu0
    %764 = vdwg.mxu0
    %v765 = vld [vmem:[%s7] sm:$0xff]
    %v766 = vld [vmem:[%s8] sm:$0x1]
    %v768 = vlaneseq
    %v769 = vshrl.u32 %v768, 7
    %v770 = vsub.s32 0, %v769
    %v771 = vrot.slane %v766, %v770
    %v774 = vsel %vm635, %v215, 0
    %v777 = vsel %vm635, %v216, 0
    %v780 = vsel %vm635, %v217, 0
    %v783 = vsel %vm635, %v218, 0
    %785 = vmatprep.subr.mxu0 0.0
    %786 = vmatpush1.msra.mxu0 0.0
    %787 = vmatprep.subr.mxu0 0.0
    %788 = vmatpush1.msra.mxu0 0.0
    %789 = vmatprep.subr.mxu0 0.0
    %790 = vmatpush1.msra.mxu0 0.0
    %791 = vmatprep.subr.mxu0 0.0
    %792 = vmatpush1.msra.mxu0 0.0
    %793 = vmatprep.subr.mxu0 0.0
    %794 = vmatpush1.msra.mxu0 0.0
    %795 = vmatprep.subr.mxu0 0.0
    %796 = vmatpush1.msra.mxu0 0.0
    %797 = vmatprep.subr.mxu0 0.0
    %798 = vmatpush1.msra.mxu0 0.0
    %799 = vmatprep.subr.mxu0 0.0
    %800 = vmatpush1.msra.mxu0 0.0
    %801 = vmatprep.subr.mxu0 0.0
    %802 = vmatpush1.msra.mxu0 0.0
    %803 = vmatprep.subr.mxu0 0.0
    %804 = vmatpush1.msra.mxu0 0.0
    %805 = vmatprep.subr.mxu0 0.0
    %806 = vmatpush1.msra.mxu0 0.0
    %807 = vmatprep.subr.mxu0 0.0
    %808 = vmatpush1.msra.mxu0 0.0
    %809 = vmatprep.subr.mxu0 0.0
    %810 = vmatpush1.msra.mxu0 0.0
    %811 = vmatprep.subr.mxu0 0.0
    %812 = vmatpush1.msra.mxu0 0.0
    %813 = vmatprep.subr.mxu0 0.0
    %814 = vmatpush1.msra.mxu0 0.0
    %815 = vmatprep.subr.mxu0 0.0
    %816 = vmatpush1.msra.mxu0 %v765
    %817 = vmatprep.subr.mxu0 0.0
    %818 = vmatpush2.msra.mxu0 0.0
    %819 = vmatprep.subr.mxu0 0.0
    %820 = vmatpush2.msra.mxu0 0.0
    %821 = vmatprep.subr.mxu0 0.0
    %822 = vmatpush2.msra.mxu0 0.0
    %823 = vmatprep.subr.mxu0 0.0
    %824 = vmatpush2.msra.mxu0 0.0
    %825 = vmatprep.subr.mxu0 0.0
    %826 = vmatpush2.msra.mxu0 0.0
    %827 = vmatprep.subr.mxu0 0.0
    %828 = vmatpush2.msra.mxu0 0.0
    %829 = vmatprep.subr.mxu0 0.0
    %830 = vmatpush2.msra.mxu0 0.0
    %831 = vmatprep.subr.mxu0 0.0
    %832 = vmatpush2.msra.mxu0 0.0
    %833 = vmatprep.subr.mxu0 0.0
    %834 = vmatpush2.msra.mxu0 0.0
    %835 = vmatprep.subr.mxu0 0.0
    %836 = vmatpush2.msra.mxu0 0.0
    %837 = vmatprep.subr.mxu0 0.0
    %838 = vmatpush2.msra.mxu0 0.0
    %839 = vmatprep.subr.mxu0 0.0
    %840 = vmatpush2.msra.mxu0 0.0
    %841 = vmatprep.subr.mxu0 0.0
    %842 = vmatpush2.msra.mxu0 0.0
    %843 = vmatprep.subr.mxu0 0.0
    %844 = vmatpush2.msra.mxu0 0.0
    %845 = vmatprep.subr.mxu0 0.0
    %846 = vmatpush2.msra.mxu0 0.0
    %847 = vmatprep.subr.mxu0 0.0
    %848 = vmatpush2.msra.mxu0 0.0
    %849 = vmatprep.mubr.f32.mxu0 0.0
    %850 = vmatmul.mubr.f32.gmra.mxu0 %v774
    %v851 = vpop.f32.mrf.mxu0
    %v852 = vadd.f32 %v771, %v851
    %v853 = vpop.f32.mrf.mxu0
    %854 = vmatprep.mubr.f32.mxu0 0.0
    %855 = vmatmul.mubr.f32.gmra.mxu0 %v777
    %v856 = vpop.f32.mrf.mxu0
    %v857 = vadd.f32 %v771, %v856
    %v858 = vpop.f32.mrf.mxu0
    %859 = vmatprep.mubr.f32.mxu0 0.0
    %860 = vmatmul.mubr.f32.gmra.mxu0 %v780
    %v861 = vpop.f32.mrf.mxu0
    %v862 = vadd.f32 %v771, %v861
    %v863 = vpop.f32.mrf.mxu0
    %864 = vmatprep.mubr.f32.mxu0 0.0
    %865 = vmatmul.mubr.f32.gmra.mxu0 %v783
    %v866 = vpop.f32.mrf.mxu0
    %v867 = vadd.f32 %v771, %v866
    %v868 = vpop.f32.mrf.mxu0
    %869 = vdwg.mxu0
    %v870 = vld [vmem:[%s9] sm:$0xff]
    %v871 = vld [vmem:[%s10] sm:$0x1]
    %v873 = vlaneseq
    %v874 = vshrl.u32 %v873, 7
    %v875 = vsub.s32 0, %v874
    %v876 = vrot.slane %v871, %v875
    %878 = vmatprep.subr.mxu0 0.0
    %879 = vmatpush1.msra.mxu0 0.0
    %880 = vmatprep.subr.mxu0 0.0
    %881 = vmatpush1.msra.mxu0 0.0
    %882 = vmatprep.subr.mxu0 0.0
    %883 = vmatpush1.msra.mxu0 0.0
    %884 = vmatprep.subr.mxu0 0.0
    %885 = vmatpush1.msra.mxu0 0.0
    %886 = vmatprep.subr.mxu0 0.0
    %887 = vmatpush1.msra.mxu0 0.0
    %888 = vmatprep.subr.mxu0 0.0
    %889 = vmatpush1.msra.mxu0 0.0
    %890 = vmatprep.subr.mxu0 0.0
    %891 = vmatpush1.msra.mxu0 0.0
    %892 = vmatprep.subr.mxu0 0.0
    %893 = vmatpush1.msra.mxu0 0.0
    %894 = vmatprep.subr.mxu0 0.0
    %895 = vmatpush1.msra.mxu0 0.0
    %896 = vmatprep.subr.mxu0 0.0
    %897 = vmatpush1.msra.mxu0 0.0
    %898 = vmatprep.subr.mxu0 0.0
    %899 = vmatpush1.msra.mxu0 0.0
    %900 = vmatprep.subr.mxu0 0.0
    %901 = vmatpush1.msra.mxu0 0.0
    %902 = vmatprep.subr.mxu0 0.0
    %903 = vmatpush1.msra.mxu0 0.0
    %904 = vmatprep.subr.mxu0 0.0
    %905 = vmatpush1.msra.mxu0 0.0
    %906 = vmatprep.subr.mxu0 0.0
    %907 = vmatpush1.msra.mxu0 0.0
    %908 = vmatprep.subr.mxu0 0.0
    %909 = vmatpush1.msra.mxu0 %v870
    %910 = vmatprep.subr.mxu0 0.0
    %911 = vmatpush2.msra.mxu0 0.0
    %912 = vmatprep.subr.mxu0 0.0
    %913 = vmatpush2.msra.mxu0 0.0
    %914 = vmatprep.subr.mxu0 0.0
    %915 = vmatpush2.msra.mxu0 0.0
    %916 = vmatprep.subr.mxu0 0.0
    %917 = vmatpush2.msra.mxu0 0.0
    %918 = vmatprep.subr.mxu0 0.0
    %919 = vmatpush2.msra.mxu0 0.0
    %920 = vmatprep.subr.mxu0 0.0
    %921 = vmatpush2.msra.mxu0 0.0
    %922 = vmatprep.subr.mxu0 0.0
    %923 = vmatpush2.msra.mxu0 0.0
    %924 = vmatprep.subr.mxu0 0.0
    %925 = vmatpush2.msra.mxu0 0.0
    %926 = vmatprep.subr.mxu0 0.0
    %927 = vmatpush2.msra.mxu0 0.0
    %928 = vmatprep.subr.mxu0 0.0
    %929 = vmatpush2.msra.mxu0 0.0
    %930 = vmatprep.subr.mxu0 0.0
    %931 = vmatpush2.msra.mxu0 0.0
    %932 = vmatprep.subr.mxu0 0.0
    %933 = vmatpush2.msra.mxu0 0.0
    %934 = vmatprep.subr.mxu0 0.0
    %935 = vmatpush2.msra.mxu0 0.0
    %936 = vmatprep.subr.mxu0 0.0
    %937 = vmatpush2.msra.mxu0 0.0
    %938 = vmatprep.subr.mxu0 0.0
    %939 = vmatpush2.msra.mxu0 0.0
    %940 = vmatprep.subr.mxu0 0.0
    %941 = vmatpush2.msra.mxu0 0.0
    %942 = vmatprep.mubr.f32.mxu0 0.0
    %943 = vmatmul.mubr.f32.gmra.mxu0 %v774
    %v944 = vpop.f32.mrf.mxu0
    %v945 = vadd.f32 %v876, %v944
    %v946 = vpop.f32.mrf.mxu0
    %947 = vmatprep.mubr.f32.mxu0 0.0
    %948 = vmatmul.mubr.f32.gmra.mxu0 %v777
    %v949 = vpop.f32.mrf.mxu0
    %v950 = vadd.f32 %v876, %v949
    %v951 = vpop.f32.mrf.mxu0
    %952 = vmatprep.mubr.f32.mxu0 0.0
    %953 = vmatmul.mubr.f32.gmra.mxu0 %v780
    %v954 = vpop.f32.mrf.mxu0
    %v955 = vadd.f32 %v876, %v954
    %v956 = vpop.f32.mrf.mxu0
    %957 = vmatprep.mubr.f32.mxu0 0.0
    %958 = vmatmul.mubr.f32.gmra.mxu0 %v783
    %v959 = vpop.f32.mrf.mxu0
    %v960 = vadd.f32 %v876, %v959
    %v961 = vpop.f32.mrf.mxu0
    %962 = vdwg.mxu0
    %963 = vmatprep.subr.mxu0 0.0
    %964 = vmatpush1.msra.mxu0 0.0
    %965 = vmatprep.subr.mxu0 0.0
    %966 = vmatpush1.msra.mxu0 0.0
    %967 = vmatprep.subr.mxu0 0.0
    %968 = vmatpush1.msra.mxu0 0.0
    %969 = vmatprep.subr.mxu0 0.0
    %970 = vmatpush1.msra.mxu0 0.0
    %971 = vmatprep.subr.mxu0 0.0
    %972 = vmatpush1.msra.mxu0 0.0
    %973 = vmatprep.subr.mxu0 0.0
    %974 = vmatpush1.msra.mxu0 0.0
    %975 = vmatprep.subr.mxu0 0.0
    %976 = vmatpush1.msra.mxu0 0.0
    %977 = vmatprep.subr.mxu0 0.0
    %978 = vmatpush1.msra.mxu0 0.0
    %979 = vmatprep.subr.mxu0 0.0
    %980 = vmatpush1.msra.mxu0 0.0
    %981 = vmatprep.subr.mxu0 0.0
    %982 = vmatpush1.msra.mxu0 0.0
    %983 = vmatprep.subr.mxu0 0.0
    %984 = vmatpush1.msra.mxu0 0.0
    %985 = vmatprep.subr.mxu0 0.0
    %986 = vmatpush1.msra.mxu0 0.0
    %987 = vmatprep.subr.mxu0 0.0
    %988 = vmatpush1.msra.mxu0 %v867
    %989 = vmatprep.subr.mxu0 0.0
    %990 = vmatpush1.msra.mxu0 %v862
    %991 = vmatprep.subr.mxu0 0.0
    %992 = vmatpush1.msra.mxu0 %v857
    %993 = vmatprep.subr.mxu0 0.0
    %994 = vmatpush1.msra.mxu0 %v852
    %995 = vmatprep.subr.mxu0 0.0
    %996 = vmatpush2.msra.mxu0 0.0
    %997 = vmatprep.subr.mxu0 0.0
    %998 = vmatpush2.msra.mxu0 0.0
    %999 = vmatprep.subr.mxu0 0.0
    %1000 = vmatpush2.msra.mxu0 0.0
    %1001 = vmatprep.subr.mxu0 0.0
    %1002 = vmatpush2.msra.mxu0 0.0
    %1003 = vmatprep.subr.mxu0 0.0
    %1004 = vmatpush2.msra.mxu0 0.0
    %1005 = vmatprep.subr.mxu0 0.0
    %1006 = vmatpush2.msra.mxu0 0.0
    %1007 = vmatprep.subr.mxu0 0.0
    %1008 = vmatpush2.msra.mxu0 0.0
    %1009 = vmatprep.subr.mxu0 0.0
    %1010 = vmatpush2.msra.mxu0 0.0
    %1011 = vmatprep.subr.mxu0 0.0
    %1012 = vmatpush2.msra.mxu0 0.0
    %1013 = vmatprep.subr.mxu0 0.0
    %1014 = vmatpush2.msra.mxu0 0.0
    %1015 = vmatprep.subr.mxu0 0.0
    %1016 = vmatpush2.msra.mxu0 0.0
    %1017 = vmatprep.subr.mxu0 0.0
    %1018 = vmatpush2.msra.mxu0 0.0
    %1019 = vmatprep.subr.mxu0 0.0
    %1020 = vmatpush2.msra.mxu0 0.0
    %1021 = vmatprep.subr.mxu0 0.0
    %1022 = vmatpush2.msra.mxu0 0.0
    %1023 = vmatprep.subr.mxu0 0.0
    %1024 = vmatpush2.msra.mxu0 0.0
    %1025 = vmatprep.subr.mxu0 0.0
    %1026 = vmatpush2.msra.mxu0 0.0
    %1027 = vmatprep.mubr.f32.mxu0 0.0
    %1028 = vmatmul.mubr.f32.gmra.mxu0 %v221
    %v1029 = vpop.f32.mrf.mxu0
    %v1030 = vadd.f32 0.0, %v1029
    %v1031 = vpop.f32.mrf.mxu0
    %1032 = vmatprep.mubr.f32.mxu0 0.0
    %1033 = vmatmul.mubr.f32.gmra.mxu0 %v224
    %v1034 = vpop.f32.mrf.mxu0
    %v1035 = vadd.f32 0.0, %v1034
    %v1036 = vpop.f32.mrf.mxu0
    %1037 = vmatprep.mubr.f32.mxu0 0.0
    %1038 = vmatmul.mubr.f32.gmra.mxu0 %v227
    %v1039 = vpop.f32.mrf.mxu0
    %v1040 = vadd.f32 0.0, %v1039
    %v1041 = vpop.f32.mrf.mxu0
    %1042 = vmatprep.mubr.f32.mxu0 0.0
    %1043 = vmatmul.mubr.f32.gmra.mxu0 %v230
    %v1044 = vpop.f32.mrf.mxu0
    %v1045 = vadd.f32 0.0, %v1044
    %v1046 = vpop.f32.mrf.mxu0
    %1047 = vmatprep.mubr.f32.mxu0 0.0
    %1048 = vmatmul.mubr.f32.gmra.mxu0 %v233
    %v1049 = vpop.f32.mrf.mxu0
    %v1050 = vadd.f32 0.0, %v1049
    %v1051 = vpop.f32.mrf.mxu0
    %1052 = vmatprep.mubr.f32.mxu0 0.0
    %1053 = vmatmul.mubr.f32.gmra.mxu0 %v236
    %v1054 = vpop.f32.mrf.mxu0
    %v1055 = vadd.f32 0.0, %v1054
    %v1056 = vpop.f32.mrf.mxu0
    %1057 = vmatprep.mubr.f32.mxu0 0.0
    %1058 = vmatmul.mubr.f32.gmra.mxu0 %v239
    %v1059 = vpop.f32.mrf.mxu0
    %v1060 = vadd.f32 0.0, %v1059
    %v1061 = vpop.f32.mrf.mxu0
    %1062 = vmatprep.mubr.f32.mxu0 0.0
    %1063 = vmatmul.mubr.f32.gmra.mxu0 %v242
    %v1064 = vpop.f32.mrf.mxu0
    %v1065 = vadd.f32 0.0, %v1064
    %v1066 = vpop.f32.mrf.mxu0
    %1067 = vdwg.mxu0
    %1068 = vmatprep.subr.mxu0 0.0
    %1069 = vmatpush1.msra.mxu0 0.0
    %1070 = vmatprep.subr.mxu0 0.0
    %1071 = vmatpush1.msra.mxu0 0.0
    %1072 = vmatprep.subr.mxu0 0.0
    %1073 = vmatpush1.msra.mxu0 0.0
    %1074 = vmatprep.subr.mxu0 0.0
    %1075 = vmatpush1.msra.mxu0 0.0
    %1076 = vmatprep.subr.mxu0 0.0
    %1077 = vmatpush1.msra.mxu0 0.0
    %1078 = vmatprep.subr.mxu0 0.0
    %1079 = vmatpush1.msra.mxu0 0.0
    %1080 = vmatprep.subr.mxu0 0.0
    %1081 = vmatpush1.msra.mxu0 0.0
    %1082 = vmatprep.subr.mxu0 0.0
    %1083 = vmatpush1.msra.mxu0 0.0
    %1084 = vmatprep.subr.mxu0 0.0
    %1085 = vmatpush1.msra.mxu0 0.0
    %1086 = vmatprep.subr.mxu0 0.0
    %1087 = vmatpush1.msra.mxu0 0.0
    %1088 = vmatprep.subr.mxu0 0.0
    %1089 = vmatpush1.msra.mxu0 0.0
    %1090 = vmatprep.subr.mxu0 0.0
    %1091 = vmatpush1.msra.mxu0 0.0
    %1092 = vmatprep.subr.mxu0 0.0
    %1093 = vmatpush1.msra.mxu0 %v960
    %1094 = vmatprep.subr.mxu0 0.0
    %1095 = vmatpush1.msra.mxu0 %v955
    %1096 = vmatprep.subr.mxu0 0.0
    %1097 = vmatpush1.msra.mxu0 %v950
    %1098 = vmatprep.subr.mxu0 0.0
    %1099 = vmatpush1.msra.mxu0 %v945
    %1100 = vmatprep.subr.mxu0 0.0
    %1101 = vmatpush2.msra.mxu0 0.0
    %1102 = vmatprep.subr.mxu0 0.0
    %1103 = vmatpush2.msra.mxu0 0.0
    %1104 = vmatprep.subr.mxu0 0.0
    %1105 = vmatpush2.msra.mxu0 0.0
    %1106 = vmatprep.subr.mxu0 0.0
    %1107 = vmatpush2.msra.mxu0 0.0
    %1108 = vmatprep.subr.mxu0 0.0
    %1109 = vmatpush2.msra.mxu0 0.0
    %1110 = vmatprep.subr.mxu0 0.0
    %1111 = vmatpush2.msra.mxu0 0.0
    %1112 = vmatprep.subr.mxu0 0.0
    %1113 = vmatpush2.msra.mxu0 0.0
    %1114 = vmatprep.subr.mxu0 0.0
    %1115 = vmatpush2.msra.mxu0 0.0
    %1116 = vmatprep.subr.mxu0 0.0
    %1117 = vmatpush2.msra.mxu0 0.0
    %1118 = vmatprep.subr.mxu0 0.0
    %1119 = vmatpush2.msra.mxu0 0.0
    %1120 = vmatprep.subr.mxu0 0.0
    %1121 = vmatpush2.msra.mxu0 0.0
    %1122 = vmatprep.subr.mxu0 0.0
    %1123 = vmatpush2.msra.mxu0 0.0
    %1124 = vmatprep.subr.mxu0 0.0
    %1125 = vmatpush2.msra.mxu0 0.0
    %1126 = vmatprep.subr.mxu0 0.0
    %1127 = vmatpush2.msra.mxu0 0.0
    %1128 = vmatprep.subr.mxu0 0.0
    %1129 = vmatpush2.msra.mxu0 0.0
    %1130 = vmatprep.subr.mxu0 0.0
    %1131 = vmatpush2.msra.mxu0 0.0
    %1132 = vmatprep.mubr.f32.mxu0 0.0
    %1133 = vmatmul.mubr.f32.gmra.mxu0 %v350
    %v1134 = vpop.f32.mrf.mxu0
    %v1135 = vadd.f32 %v1030, %v1134
    %v1136 = vpop.f32.mrf.mxu0
    %1137 = vmatprep.mubr.f32.mxu0 0.0
    %1138 = vmatmul.mubr.f32.gmra.mxu0 %v353
    %v1139 = vpop.f32.mrf.mxu0
    %v1140 = vadd.f32 %v1035, %v1139
    %v1141 = vpop.f32.mrf.mxu0
    %1142 = vmatprep.mubr.f32.mxu0 0.0
    %1143 = vmatmul.mubr.f32.gmra.mxu0 %v356
    %v1144 = vpop.f32.mrf.mxu0
    %v1145 = vadd.f32 %v1040, %v1144
    %v1146 = vpop.f32.mrf.mxu0
    %1147 = vmatprep.mubr.f32.mxu0 0.0
    %1148 = vmatmul.mubr.f32.gmra.mxu0 %v359
    %v1149 = vpop.f32.mrf.mxu0
    %v1150 = vadd.f32 %v1045, %v1149
    %v1151 = vpop.f32.mrf.mxu0
    %1152 = vmatprep.mubr.f32.mxu0 0.0
    %1153 = vmatmul.mubr.f32.gmra.mxu0 %v362
    %v1154 = vpop.f32.mrf.mxu0
    %v1155 = vadd.f32 %v1050, %v1154
    %v1156 = vpop.f32.mrf.mxu0
    %1157 = vmatprep.mubr.f32.mxu0 0.0
    %1158 = vmatmul.mubr.f32.gmra.mxu0 %v365
    %v1159 = vpop.f32.mrf.mxu0
    %v1160 = vadd.f32 %v1055, %v1159
    %v1161 = vpop.f32.mrf.mxu0
    %1162 = vmatprep.mubr.f32.mxu0 0.0
    %1163 = vmatmul.mubr.f32.gmra.mxu0 %v368
    %v1164 = vpop.f32.mrf.mxu0
    %v1165 = vadd.f32 %v1060, %v1164
    %v1166 = vpop.f32.mrf.mxu0
    %1167 = vmatprep.mubr.f32.mxu0 0.0
    %1168 = vmatmul.mubr.f32.gmra.mxu0 %v371
    %v1169 = vpop.f32.mrf.mxu0
    %v1170 = vadd.f32 %v1065, %v1169
    %v1171 = vpop.f32.mrf.mxu0
    %1172 = vdwg.mxu0
    %v1173 = vadd.f32 %v1135, %v727
    %v1174 = vadd.f32 %v1140, %v732
    %v1175 = vadd.f32 %v1145, %v737
    %v1176 = vadd.f32 %v1150, %v742
    %v1177 = vadd.f32 %v1155, %v747
    %v1178 = vadd.f32 %v1160, %v752
    %v1179 = vadd.f32 %v1165, %v757
    %v1180 = vadd.f32 %v1170, %v762
    %vm1181 = vcmp.gt.f32.partialorder %v1173, 0.0
    %vm1182 = vcmp.gt.f32.partialorder %v1174, 0.0
    %vm1183 = vcmp.gt.f32.partialorder %v1175, 0.0
    %vm1184 = vcmp.gt.f32.partialorder %v1176, 0.0
    %vm1185 = vcmp.gt.f32.partialorder %v1177, 0.0
    %vm1186 = vcmp.gt.f32.partialorder %v1178, 0.0
    %vm1187 = vcmp.gt.f32.partialorder %v1179, 0.0
    %vm1188 = vcmp.gt.f32.partialorder %v1180, 0.0
    %v1189 = vmul.f32 %v1173, 0.2
    %v1190 = vmul.f32 %v1174, 0.2
    %v1191 = vmul.f32 %v1175, 0.2
    %v1192 = vmul.f32 %v1176, 0.2
    %v1193 = vmul.f32 %v1177, 0.2
    %v1194 = vmul.f32 %v1178, 0.2
    %v1195 = vmul.f32 %v1179, 0.2
    %v1196 = vmul.f32 %v1180, 0.2
    %v1197 = vsel %vm1181, %v1173, %v1189
    %v1198 = vsel %vm1182, %v1174, %v1190
    %v1199 = vsel %vm1183, %v1175, %v1191
    %v1200 = vsel %vm1184, %v1176, %v1192
    %v1201 = vsel %vm1185, %v1177, %v1193
    %v1202 = vsel %vm1186, %v1178, %v1194
    %v1203 = vsel %vm1187, %v1179, %v1195
    %v1204 = vsel %vm1188, %v1180, %v1196
    %v1205 = vld [vmem:[%s11] sm:$0x3]
    %vm1206 = vcmp.gt.f32.partialorder %v97, 0.5
    %vm1207 = vcmp.gt.f32.partialorder %v98, 0.5
    %vm1208 = vcmp.gt.f32.partialorder %v99, 0.5
    %vm1209 = vcmp.gt.f32.partialorder %v100, 0.5
    %vm1210 = vcmp.gt.f32.partialorder %v101, 0.5
    %vm1211 = vcmp.gt.f32.partialorder %v102, 0.5
    %vm1212 = vcmp.gt.f32.partialorder %v103, 0.5
    %vm1213 = vcmp.gt.f32.partialorder %v104, 0.5
    %v1214 = vlaneseq
    %v1215 = vshrl.u32 %v1214, 7
    %v1216 = vsub.s32 0, %v1215
    %v1217 = vrot.slane %v1205, %v1216
    %v1218 = vmul.f32 %v1197, %v1217
    %v1219 = vmul.f32 %v1198, %v1217
    %v1220 = vmul.f32 %v1199, %v1217
    %v1221 = vmul.f32 %v1200, %v1217
    %v1222 = vmul.f32 %v1201, %v1217
    %v1223 = vmul.f32 %v1202, %v1217
    %v1224 = vmul.f32 %v1203, %v1217
    %v1225 = vmul.f32 %v1204, %v1217
    %v1226 = vsel %vm635, %v1218, 0.0
    %1227 = vadd.xlane.f32.xlu0 %v1226
    %v1228 = vpop.xlane.xlu0 %1227
    %v1229 = vsel %vm635, %v1219, 0.0
    %1230 = vadd.xlane.f32.xlu0 %v1229
    %v1231 = vpop.xlane.xlu0 %1230
    %v1232 = vsel %vm635, %v1220, 0.0
    %1233 = vadd.xlane.f32.xlu0 %v1232
    %v1234 = vpop.xlane.xlu0 %1233
    %v1235 = vsel %vm635, %v1221, 0.0
    %1236 = vadd.xlane.f32.xlu0 %v1235
    %v1237 = vpop.xlane.xlu0 %1236
    %v1238 = vsel %vm635, %v1222, 0.0
    %1239 = vadd.xlane.f32.xlu0 %v1238
    %v1240 = vpop.xlane.xlu0 %1239
    %v1241 = vsel %vm635, %v1223, 0.0
    %1242 = vadd.xlane.f32.xlu0 %v1241
    %v1243 = vpop.xlane.xlu0 %1242
    %v1244 = vsel %vm635, %v1224, 0.0
    %1245 = vadd.xlane.f32.xlu0 %v1244
    %v1246 = vpop.xlane.xlu0 %1245
    %v1247 = vsel %vm635, %v1225, 0.0
    %1248 = vadd.xlane.f32.xlu0 %v1247
    %v1249 = vpop.xlane.xlu0 %1248
    %v1250 = vsel %vm1206, %v1228, -1e+30
    %v1251 = vsel %vm1207, %v1231, -1e+30
    %v1252 = vsel %vm1208, %v1234, -1e+30
    %v1253 = vsel %vm1209, %v1237, -1e+30
    %v1254 = vsel %vm1210, %v1240, -1e+30
    %v1255 = vsel %vm1211, %v1243, -1e+30
    %v1256 = vsel %vm1212, %v1246, -1e+30
    %v1257 = vsel %vm1213, %v1249, -1e+30
    %v1258 = vsel %vm219, %v1250, -inf
    %v1259 = vsel %vm219, %v1251, -inf
    %v1260 = vsel %vm219, %v1252, -inf
    %v1261 = vsel %vm219, %v1253, -inf
    %v1262 = vsel %vm219, %v1254, -inf
    %v1263 = vmax.f32 %v1258, %v1262
    %v1264 = vsel %vm219, %v1255, -inf
    %v1265 = vmax.f32 %v1259, %v1264
    %v1266 = vsel %vm219, %v1256, -inf
    %v1267 = vmax.f32 %v1260, %v1266
    %v1268 = vsel %vm219, %v1257, -inf
    %v1269 = vmax.f32 %v1261, %v1268
    %v1270 = vmax.f32 %v1263, %v1265
    %v1271 = vmax.f32 %v1267, %v1269
    %v1272 = vmax.f32 %v1270, %v1271
    %v1273 = vrot.slane %v1272, 4
    %v1274 = vmax.f32 %v1272, %v1273
    %v1275 = vrot.slane %v1274, 2
    %v1276 = vmax.f32 %v1274, %v1275
    %v1277 = vrot.slane %v1276, 1
    %v1278 = vmax.f32 %v1276, %v1277
    %v1279 = vmul.f32 %v97, %v1278
    %v1280 = vmul.f32 %v98, %v1278
    %v1281 = vmul.f32 %v99, %v1278
    %v1282 = vmul.f32 %v100, %v1278
    %v1283 = vmul.f32 %v101, %v1278
    %v1284 = vmul.f32 %v102, %v1278
    %v1285 = vmul.f32 %v103, %v1278
    %v1286 = vmul.f32 %v104, %v1278
    %v1287 = vsel %vm219, %v1279, 0.0
    %1288 = vadd.xlane.f32.xlu0 %v1287
    %v1289 = vpop.xlane.xlu0 %1288
    %v1290 = vsel %vm219, %v1280, 0.0
    %1291 = vadd.xlane.f32.xlu0 %v1290
    %v1292 = vpop.xlane.xlu0 %1291
    %v1293 = vsel %vm219, %v1281, 0.0
    %1294 = vadd.xlane.f32.xlu0 %v1293
    %v1295 = vpop.xlane.xlu0 %1294
    %v1296 = vsel %vm219, %v1282, 0.0
    %1297 = vadd.xlane.f32.xlu0 %v1296
    %v1298 = vpop.xlane.xlu0 %1297
    %v1299 = vsel %vm219, %v1283, 0.0
    %1300 = vadd.xlane.f32.xlu0 %v1299
    %v1301 = vpop.xlane.xlu0 %1300
    %v1302 = vsel %vm219, %v1284, 0.0
    %1303 = vadd.xlane.f32.xlu0 %v1302
    %v1304 = vpop.xlane.xlu0 %1303
    %v1305 = vsel %vm219, %v1285, 0.0
    %1306 = vadd.xlane.f32.xlu0 %v1305
    %v1307 = vpop.xlane.xlu0 %1306
    %v1308 = vsel %vm219, %v1286, 0.0
    %1309 = vadd.xlane.f32.xlu0 %v1308
    %v1310 = vpop.xlane.xlu0 %1309
    %v1311 = vsub.f32 %v1228, %v1289
    %v1312 = vsub.f32 %v1231, %v1292
    %v1313 = vsub.f32 %v1234, %v1295
    %v1314 = vsub.f32 %v1237, %v1298
    %v1315 = vsub.f32 %v1240, %v1301
    %v1316 = vsub.f32 %v1243, %v1304
    %v1317 = vsub.f32 %v1246, %v1307
    %v1318 = vsub.f32 %v1249, %v1310
    %v1319 = vmul.f32 %v1311, 1.442695
    %v1320 = vpow.pop %v1319
    %v1321 = vmul.f32 %v1312, 1.442695
    %v1322 = vpow.pop %v1321
    %v1323 = vmul.f32 %v1313, 1.442695
    %v1324 = vpow.pop %v1323
    %v1325 = vmul.f32 %v1314, 1.442695
    %v1326 = vpow.pop %v1325
    %v1327 = vmul.f32 %v1315, 1.442695
    %v1328 = vpow.pop %v1327
    %v1329 = vmul.f32 %v1316, 1.442695
    %v1330 = vpow.pop %v1329
    %v1331 = vmul.f32 %v1317, 1.442695
    %v1332 = vpow.pop %v1331
    %v1333 = vmul.f32 %v1318, 1.442695
    %v1334 = vpow.pop %v1333
    %v1335 = vmul.f32 %v97, %v1320
    %v1336 = vmul.f32 %v98, %v1322
    %v1337 = vmul.f32 %v99, %v1324
    %v1338 = vmul.f32 %v100, %v1326
    %v1339 = vmul.f32 %v101, %v1328
    %v1340 = vmul.f32 %v102, %v1330
    %v1341 = vmul.f32 %v103, %v1332
    %v1342 = vmul.f32 %v104, %v1334
    %v1343 = vsel %vm219, %v1335, 0.0
    %v1344 = vsel %vm219, %v1336, 0.0
    %v1345 = vadd.f32 %v1343, %v1344
    %v1346 = vsel %vm219, %v1337, 0.0
    %v1347 = vadd.f32 %v1345, %v1346
    %v1348 = vsel %vm219, %v1338, 0.0
    %v1349 = vadd.f32 %v1347, %v1348
    %v1350 = vsel %vm219, %v1339, 0.0
    %v1351 = vadd.f32 %v1349, %v1350
    %v1352 = vsel %vm219, %v1340, 0.0
    %v1353 = vadd.f32 %v1351, %v1352
    %v1354 = vsel %vm219, %v1341, 0.0
    %v1355 = vadd.f32 %v1353, %v1354
    %v1356 = vsel %vm219, %v1342, 0.0
    %v1357 = vadd.f32 %v1355, %v1356
    %v1358 = vrot.slane %v1357, 4
    %v1359 = vadd.f32 %v1357, %v1358
    %v1360 = vrot.slane %v1359, 2
    %v1361 = vadd.f32 %v1359, %v1360
    %v1362 = vrot.slane %v1361, 1
    %v1363 = vadd.f32 %v1361, %v1362
    %v1364 = vmul.f32 %v97, %v1363
    %v1365 = vmul.f32 %v98, %v1363
    %v1366 = vmul.f32 %v99, %v1363
    %v1367 = vmul.f32 %v100, %v1363
    %v1368 = vmul.f32 %v101, %v1363
    %v1369 = vmul.f32 %v102, %v1363
    %v1370 = vmul.f32 %v103, %v1363
    %v1371 = vmul.f32 %v104, %v1363
    %v1372 = vsel %vm219, %v1364, 0.0
    %1373 = vadd.xlane.f32.xlu0 %v1372
    %v1374 = vpop.xlane.xlu0 %1373
    %v1375 = vsel %vm219, %v1365, 0.0
    %1376 = vadd.xlane.f32.xlu0 %v1375
    %v1377 = vpop.xlane.xlu0 %1376
    %v1378 = vsel %vm219, %v1366, 0.0
    %1379 = vadd.xlane.f32.xlu0 %v1378
    %v1380 = vpop.xlane.xlu0 %1379
    %v1381 = vsel %vm219, %v1367, 0.0
    %1382 = vadd.xlane.f32.xlu0 %v1381
    %v1383 = vpop.xlane.xlu0 %1382
    %v1384 = vsel %vm219, %v1368, 0.0
    %1385 = vadd.xlane.f32.xlu0 %v1384
    %v1386 = vpop.xlane.xlu0 %1385
    %v1387 = vsel %vm219, %v1369, 0.0
    %1388 = vadd.xlane.f32.xlu0 %v1387
    %v1389 = vpop.xlane.xlu0 %1388
    %v1390 = vsel %vm219, %v1370, 0.0
    %1391 = vadd.xlane.f32.xlu0 %v1390
    %v1392 = vpop.xlane.xlu0 %1391
    %v1393 = vsel %vm219, %v1371, 0.0
    %1394 = vadd.xlane.f32.xlu0 %v1393
    %v1395 = vpop.xlane.xlu0 %1394
    %v1396 = vrcp.pop %v1374
    %v1397 = vrcp.pop %v1377
    %v1398 = vrcp.pop %v1380
    %v1399 = vrcp.pop %v1383
    %v1400 = vrcp.pop %v1386
    %v1401 = vrcp.pop %v1389
    %v1402 = vrcp.pop %v1392
    %v1403 = vrcp.pop %v1395
    %v1404 = vmul.f32 %v1320, %v1396
    %v1405 = vmul.f32 %v1322, %v1397
    %v1406 = vmul.f32 %v1324, %v1398
    %v1407 = vmul.f32 %v1326, %v1399
    %v1408 = vmul.f32 %v1328, %v1400
    %v1409 = vmul.f32 %v1330, %v1401
    %v1410 = vmul.f32 %v1332, %v1402
    %v1411 = vmul.f32 %v1334, %v1403
    %v1412 = vmul.f32 %v1030, %v1404
    %v1413 = vmul.f32 %v1035, %v1405
    %v1414 = vmul.f32 %v1040, %v1406
    %v1415 = vmul.f32 %v1045, %v1407
    %v1416 = vmul.f32 %v1050, %v1408
    %v1417 = vmul.f32 %v1055, %v1409
    %v1418 = vmul.f32 %v1060, %v1410
    %v1419 = vmul.f32 %v1065, %v1411
    %v1420 = vsel %vm635, %v1412, 0.0
    %1421 = vadd.xlane.f32.xlu0 %v1420
    %v1422 = vpop.xlane.xlu0 %1421
    %v1423 = vsel %vm635, %v1413, 0.0
    %1424 = vadd.xlane.f32.xlu0 %v1423
    %v1425 = vpop.xlane.xlu0 %1424
    %v1426 = vsel %vm635, %v1414, 0.0
    %1427 = vadd.xlane.f32.xlu0 %v1426
    %v1428 = vpop.xlane.xlu0 %1427
    %v1429 = vsel %vm635, %v1415, 0.0
    %1430 = vadd.xlane.f32.xlu0 %v1429
    %v1431 = vpop.xlane.xlu0 %1430
    %v1432 = vsel %vm635, %v1416, 0.0
    %1433 = vadd.xlane.f32.xlu0 %v1432
    %v1434 = vpop.xlane.xlu0 %1433
    %v1435 = vsel %vm635, %v1417, 0.0
    %1436 = vadd.xlane.f32.xlu0 %v1435
    %v1437 = vpop.xlane.xlu0 %1436
    %v1438 = vsel %vm635, %v1418, 0.0
    %1439 = vadd.xlane.f32.xlu0 %v1438
    %v1440 = vpop.xlane.xlu0 %1439
    %v1441 = vsel %vm635, %v1419, 0.0
    %1442 = vadd.xlane.f32.xlu0 %v1441
    %v1443 = vpop.xlane.xlu0 %1442
    %v1444 = vmul.f32 %v97, %v1422
    %v1445 = vmul.f32 %v98, %v1425
    %v1446 = vmul.f32 %v99, %v1428
    %v1447 = vmul.f32 %v100, %v1431
    %v1448 = vmul.f32 %v101, %v1434
    %v1449 = vmul.f32 %v102, %v1437
    %v1450 = vmul.f32 %v103, %v1440
    %v1451 = vmul.f32 %v104, %v1443
    %v1452 = vsel %vm219, %v1444, 0.0
    %v1453 = vsel %vm219, %v1445, 0.0
    %v1454 = vadd.f32 %v1452, %v1453
    %v1455 = vsel %vm219, %v1446, 0.0
    %v1456 = vadd.f32 %v1454, %v1455
    %v1457 = vsel %vm219, %v1447, 0.0
    %v1458 = vadd.f32 %v1456, %v1457
    %v1459 = vsel %vm219, %v1448, 0.0
    %v1460 = vadd.f32 %v1458, %v1459
    %v1461 = vsel %vm219, %v1449, 0.0
    %v1462 = vadd.f32 %v1460, %v1461
    %v1463 = vsel %vm219, %v1450, 0.0
    %v1464 = vadd.f32 %v1462, %v1463
    %v1465 = vsel %vm219, %v1451, 0.0
    %v1466 = vadd.f32 %v1464, %v1465
    %v1467 = vrot.slane %v1466, 4
    %v1468 = vadd.f32 %v1466, %v1467
    %v1469 = vrot.slane %v1468, 2
    %v1470 = vadd.f32 %v1468, %v1469
    %v1471 = vrot.slane %v1470, 1
    %v1472 = vadd.f32 %v1470, %v1471
    %v1473 = vadd.f32 %v1472, 0.0
    %v1474 = vlaneseq
    %v1475 = vshrl.u32 %v1474, 7
    %v1476 = vsub.s32 1, %v1475
    %v1477 = vrot.slane %v1205, %v1476
    %1479 = vrot.lane.b32.xlu0 %v1477, 8
    %v1480 = vpop.permute.xlu0 %1479
    %v1482 = vmul.f32 %v1197, %v1480
    %v1483 = vmul.f32 %v1198, %v1480
    %v1484 = vmul.f32 %v1199, %v1480
    %v1485 = vmul.f32 %v1200, %v1480
    %v1486 = vmul.f32 %v1201, %v1480
    %v1487 = vmul.f32 %v1202, %v1480
    %v1488 = vmul.f32 %v1203, %v1480
    %v1489 = vmul.f32 %v1204, %v1480
    %1498 = vrot.lane.b32.xlu0 %v1482, 120
    %v1499 = vpop.permute.xlu0 %1498
    %1500 = vrot.lane.b32.xlu0 %v1483, 120
    %v1501 = vpop.permute.xlu0 %1500
    %1502 = vrot.lane.b32.xlu0 %v1484, 120
    %v1503 = vpop.permute.xlu0 %1502
    %1504 = vrot.lane.b32.xlu0 %v1485, 120
    %v1505 = vpop.permute.xlu0 %1504
    %1506 = vrot.lane.b32.xlu0 %v1486, 120
    %v1507 = vpop.permute.xlu0 %1506
    %1508 = vrot.lane.b32.xlu0 %v1487, 120
    %v1509 = vpop.permute.xlu0 %1508
    %1510 = vrot.lane.b32.xlu0 %v1488, 120
    %v1511 = vpop.permute.xlu0 %1510
    %1512 = vrot.lane.b32.xlu0 %v1489, 120
    %v1513 = vpop.permute.xlu0 %1512
    %v1522 = vsel %vm635, %v1499, 0.0
    %1523 = vadd.xlane.f32.xlu0 %v1522
    %v1524 = vpop.xlane.xlu0 %1523
    %v1525 = vsel %vm635, %v1501, 0.0
    %1526 = vadd.xlane.f32.xlu0 %v1525
    %v1527 = vpop.xlane.xlu0 %1526
    %v1528 = vsel %vm635, %v1503, 0.0
    %1529 = vadd.xlane.f32.xlu0 %v1528
    %v1530 = vpop.xlane.xlu0 %1529
    %v1531 = vsel %vm635, %v1505, 0.0
    %1532 = vadd.xlane.f32.xlu0 %v1531
    %v1533 = vpop.xlane.xlu0 %1532
    %v1534 = vsel %vm635, %v1507, 0.0
    %1535 = vadd.xlane.f32.xlu0 %v1534
    %v1536 = vpop.xlane.xlu0 %1535
    %v1537 = vsel %vm635, %v1509, 0.0
    %1538 = vadd.xlane.f32.xlu0 %v1537
    %v1539 = vpop.xlane.xlu0 %1538
    %v1540 = vsel %vm635, %v1511, 0.0
    %1541 = vadd.xlane.f32.xlu0 %v1540
    %v1542 = vpop.xlane.xlu0 %1541
    %v1543 = vsel %vm635, %v1513, 0.0
    %1544 = vadd.xlane.f32.xlu0 %v1543
    %v1545 = vpop.xlane.xlu0 %1544
    %v1546 = vsel %vm1206, %v1524, -1e+30
    %v1547 = vsel %vm1207, %v1527, -1e+30
    %v1548 = vsel %vm1208, %v1530, -1e+30
    %v1549 = vsel %vm1209, %v1533, -1e+30
    %v1550 = vsel %vm1210, %v1536, -1e+30
    %v1551 = vsel %vm1211, %v1539, -1e+30
    %v1552 = vsel %vm1212, %v1542, -1e+30
    %v1553 = vsel %vm1213, %v1545, -1e+30
    %v1554 = vsel %vm219, %v1546, -inf
    %v1555 = vsel %vm219, %v1547, -inf
    %v1556 = vsel %vm219, %v1548, -inf
    %v1557 = vsel %vm219, %v1549, -inf
    %v1558 = vsel %vm219, %v1550, -inf
    %v1559 = vmax.f32 %v1554, %v1558
    %v1560 = vsel %vm219, %v1551, -inf
    %v1561 = vmax.f32 %v1555, %v1560
    %v1562 = vsel %vm219, %v1552, -inf
    %v1563 = vmax.f32 %v1556, %v1562
    %v1564 = vsel %vm219, %v1553, -inf
    %v1565 = vmax.f32 %v1557, %v1564
    %v1566 = vmax.f32 %v1559, %v1561
    %v1567 = vmax.f32 %v1563, %v1565
    %v1568 = vmax.f32 %v1566, %v1567
    %v1569 = vrot.slane %v1568, 4
    %v1570 = vmax.f32 %v1568, %v1569
    %v1571 = vrot.slane %v1570, 2
    %v1572 = vmax.f32 %v1570, %v1571
    %v1573 = vrot.slane %v1572, 1
    %v1574 = vmax.f32 %v1572, %v1573
    %v1575 = vmul.f32 %v97, %v1574
    %v1576 = vmul.f32 %v98, %v1574
    %v1577 = vmul.f32 %v99, %v1574
    %v1578 = vmul.f32 %v100, %v1574
    %v1579 = vmul.f32 %v101, %v1574
    %v1580 = vmul.f32 %v102, %v1574
    %v1581 = vmul.f32 %v103, %v1574
    %v1582 = vmul.f32 %v104, %v1574
    %v1583 = vsel %vm219, %v1575, 0.0
    %1584 = vadd.xlane.f32.xlu0 %v1583
    %v1585 = vpop.xlane.xlu0 %1584
    %v1586 = vsel %vm219, %v1576, 0.0
    %1587 = vadd.xlane.f32.xlu0 %v1586
    %v1588 = vpop.xlane.xlu0 %1587
    %v1589 = vsel %vm219, %v1577, 0.0
    %1590 = vadd.xlane.f32.xlu0 %v1589
    %v1591 = vpop.xlane.xlu0 %1590
    %v1592 = vsel %vm219, %v1578, 0.0
    %1593 = vadd.xlane.f32.xlu0 %v1592
    %v1594 = vpop.xlane.xlu0 %1593
    %v1595 = vsel %vm219, %v1579, 0.0
    %1596 = vadd.xlane.f32.xlu0 %v1595
    %v1597 = vpop.xlane.xlu0 %1596
    %v1598 = vsel %vm219, %v1580, 0.0
    %1599 = vadd.xlane.f32.xlu0 %v1598
    %v1600 = vpop.xlane.xlu0 %1599
    %v1601 = vsel %vm219, %v1581, 0.0
    %1602 = vadd.xlane.f32.xlu0 %v1601
    %v1603 = vpop.xlane.xlu0 %1602
    %v1604 = vsel %vm219, %v1582, 0.0
    %1605 = vadd.xlane.f32.xlu0 %v1604
    %v1606 = vpop.xlane.xlu0 %1605
    %v1607 = vsub.f32 %v1524, %v1585
    %v1608 = vsub.f32 %v1527, %v1588
    %v1609 = vsub.f32 %v1530, %v1591
    %v1610 = vsub.f32 %v1533, %v1594
    %v1611 = vsub.f32 %v1536, %v1597
    %v1612 = vsub.f32 %v1539, %v1600
    %v1613 = vsub.f32 %v1542, %v1603
    %v1614 = vsub.f32 %v1545, %v1606
    %v1615 = vmul.f32 %v1607, 1.442695
    %v1616 = vpow.pop %v1615
    %v1617 = vmul.f32 %v1608, 1.442695
    %v1618 = vpow.pop %v1617
    %v1619 = vmul.f32 %v1609, 1.442695
    %v1620 = vpow.pop %v1619
    %v1621 = vmul.f32 %v1610, 1.442695
    %v1622 = vpow.pop %v1621
    %v1623 = vmul.f32 %v1611, 1.442695
    %v1624 = vpow.pop %v1623
    %v1625 = vmul.f32 %v1612, 1.442695
    %v1626 = vpow.pop %v1625
    %v1627 = vmul.f32 %v1613, 1.442695
    %v1628 = vpow.pop %v1627
    %v1629 = vmul.f32 %v1614, 1.442695
    %v1630 = vpow.pop %v1629
    %v1631 = vmul.f32 %v97, %v1616
    %v1632 = vmul.f32 %v98, %v1618
    %v1633 = vmul.f32 %v99, %v1620
    %v1634 = vmul.f32 %v100, %v1622
    %v1635 = vmul.f32 %v101, %v1624
    %v1636 = vmul.f32 %v102, %v1626
    %v1637 = vmul.f32 %v103, %v1628
    %v1638 = vmul.f32 %v104, %v1630
    %v1639 = vsel %vm219, %v1631, 0.0
    %v1640 = vsel %vm219, %v1632, 0.0
    %v1641 = vadd.f32 %v1639, %v1640
    %v1642 = vsel %vm219, %v1633, 0.0
    %v1643 = vadd.f32 %v1641, %v1642
    %v1644 = vsel %vm219, %v1634, 0.0
    %v1645 = vadd.f32 %v1643, %v1644
    %v1646 = vsel %vm219, %v1635, 0.0
    %v1647 = vadd.f32 %v1645, %v1646
    %v1648 = vsel %vm219, %v1636, 0.0
    %v1649 = vadd.f32 %v1647, %v1648
    %v1650 = vsel %vm219, %v1637, 0.0
    %v1651 = vadd.f32 %v1649, %v1650
    %v1652 = vsel %vm219, %v1638, 0.0
    %v1653 = vadd.f32 %v1651, %v1652
    %v1654 = vrot.slane %v1653, 4
    %v1655 = vadd.f32 %v1653, %v1654
    %v1656 = vrot.slane %v1655, 2
    %v1657 = vadd.f32 %v1655, %v1656
    %v1658 = vrot.slane %v1657, 1
    %v1659 = vadd.f32 %v1657, %v1658
    %v1660 = vmul.f32 %v97, %v1659
    %v1661 = vmul.f32 %v98, %v1659
    %v1662 = vmul.f32 %v99, %v1659
    %v1663 = vmul.f32 %v100, %v1659
    %v1664 = vmul.f32 %v101, %v1659
    %v1665 = vmul.f32 %v102, %v1659
    %v1666 = vmul.f32 %v103, %v1659
    %v1667 = vmul.f32 %v104, %v1659
    %v1668 = vsel %vm219, %v1660, 0.0
    %1669 = vadd.xlane.f32.xlu0 %v1668
    %v1670 = vpop.xlane.xlu0 %1669
    %v1671 = vsel %vm219, %v1661, 0.0
    %1672 = vadd.xlane.f32.xlu0 %v1671
    %v1673 = vpop.xlane.xlu0 %1672
    %v1674 = vsel %vm219, %v1662, 0.0
    %1675 = vadd.xlane.f32.xlu0 %v1674
    %v1676 = vpop.xlane.xlu0 %1675
    %v1677 = vsel %vm219, %v1663, 0.0
    %1678 = vadd.xlane.f32.xlu0 %v1677
    %v1679 = vpop.xlane.xlu0 %1678
    %v1680 = vsel %vm219, %v1664, 0.0
    %1681 = vadd.xlane.f32.xlu0 %v1680
    %v1682 = vpop.xlane.xlu0 %1681
    %v1683 = vsel %vm219, %v1665, 0.0
    %1684 = vadd.xlane.f32.xlu0 %v1683
    %v1685 = vpop.xlane.xlu0 %1684
    %v1686 = vsel %vm219, %v1666, 0.0
    %1687 = vadd.xlane.f32.xlu0 %v1686
    %v1688 = vpop.xlane.xlu0 %1687
    %v1689 = vsel %vm219, %v1667, 0.0
    %1690 = vadd.xlane.f32.xlu0 %v1689
    %v1691 = vpop.xlane.xlu0 %1690
    %v1692 = vrcp.pop %v1670
    %v1693 = vrcp.pop %v1673
    %v1694 = vrcp.pop %v1676
    %v1695 = vrcp.pop %v1679
    %v1696 = vrcp.pop %v1682
    %v1697 = vrcp.pop %v1685
    %v1698 = vrcp.pop %v1688
    %v1699 = vrcp.pop %v1691
    %v1700 = vmul.f32 %v1616, %v1692
    %v1701 = vmul.f32 %v1618, %v1693
    %v1702 = vmul.f32 %v1620, %v1694
    %v1703 = vmul.f32 %v1622, %v1695
    %v1704 = vmul.f32 %v1624, %v1696
    %v1705 = vmul.f32 %v1626, %v1697
    %v1706 = vmul.f32 %v1628, %v1698
    %v1707 = vmul.f32 %v1630, %v1699
    %v1708 = vmul.f32 %v1030, %v1700
    %v1709 = vmul.f32 %v1035, %v1701
    %v1710 = vmul.f32 %v1040, %v1702
    %v1711 = vmul.f32 %v1045, %v1703
    %v1712 = vmul.f32 %v1050, %v1704
    %v1713 = vmul.f32 %v1055, %v1705
    %v1714 = vmul.f32 %v1060, %v1706
    %v1715 = vmul.f32 %v1065, %v1707
    %1724 = vrot.lane.b32.xlu0 %v1708, 120
    %v1725 = vpop.permute.xlu0 %1724
    %1726 = vrot.lane.b32.xlu0 %v1709, 120
    %v1727 = vpop.permute.xlu0 %1726
    %1728 = vrot.lane.b32.xlu0 %v1710, 120
    %v1729 = vpop.permute.xlu0 %1728
    %1730 = vrot.lane.b32.xlu0 %v1711, 120
    %v1731 = vpop.permute.xlu0 %1730
    %1732 = vrot.lane.b32.xlu0 %v1712, 120
    %v1733 = vpop.permute.xlu0 %1732
    %1734 = vrot.lane.b32.xlu0 %v1713, 120
    %v1735 = vpop.permute.xlu0 %1734
    %1736 = vrot.lane.b32.xlu0 %v1714, 120
    %v1737 = vpop.permute.xlu0 %1736
    %1738 = vrot.lane.b32.xlu0 %v1715, 120
    %v1739 = vpop.permute.xlu0 %1738
    %v1748 = vsel %vm635, %v1725, 0.0
    %1749 = vadd.xlane.f32.xlu0 %v1748
    %v1750 = vpop.xlane.xlu0 %1749
    %v1751 = vsel %vm635, %v1727, 0.0
    %1752 = vadd.xlane.f32.xlu0 %v1751
    %v1753 = vpop.xlane.xlu0 %1752
    %v1754 = vsel %vm635, %v1729, 0.0
    %1755 = vadd.xlane.f32.xlu0 %v1754
    %v1756 = vpop.xlane.xlu0 %1755
    %v1757 = vsel %vm635, %v1731, 0.0
    %1758 = vadd.xlane.f32.xlu0 %v1757
    %v1759 = vpop.xlane.xlu0 %1758
    %v1760 = vsel %vm635, %v1733, 0.0
    %1761 = vadd.xlane.f32.xlu0 %v1760
    %v1762 = vpop.xlane.xlu0 %1761
    %v1763 = vsel %vm635, %v1735, 0.0
    %1764 = vadd.xlane.f32.xlu0 %v1763
    %v1765 = vpop.xlane.xlu0 %1764
    %v1766 = vsel %vm635, %v1737, 0.0
    %1767 = vadd.xlane.f32.xlu0 %v1766
    %v1768 = vpop.xlane.xlu0 %1767
    %v1769 = vsel %vm635, %v1739, 0.0
    %1770 = vadd.xlane.f32.xlu0 %v1769
    %v1771 = vpop.xlane.xlu0 %1770
    %v1772 = vmul.f32 %v97, %v1750
    %v1773 = vmul.f32 %v98, %v1753
    %v1774 = vmul.f32 %v99, %v1756
    %v1775 = vmul.f32 %v100, %v1759
    %v1776 = vmul.f32 %v101, %v1762
    %v1777 = vmul.f32 %v102, %v1765
    %v1778 = vmul.f32 %v103, %v1768
    %v1779 = vmul.f32 %v104, %v1771
    %v1780 = vsel %vm219, %v1772, 0.0
    %v1781 = vsel %vm219, %v1773, 0.0
    %v1782 = vadd.f32 %v1780, %v1781
    %v1783 = vsel %vm219, %v1774, 0.0
    %v1784 = vadd.f32 %v1782, %v1783
    %v1785 = vsel %vm219, %v1775, 0.0
    %v1786 = vadd.f32 %v1784, %v1785
    %v1787 = vsel %vm219, %v1776, 0.0
    %v1788 = vadd.f32 %v1786, %v1787
    %v1789 = vsel %vm219, %v1777, 0.0
    %v1790 = vadd.f32 %v1788, %v1789
    %v1791 = vsel %vm219, %v1778, 0.0
    %v1792 = vadd.f32 %v1790, %v1791
    %v1793 = vsel %vm219, %v1779, 0.0
    %v1794 = vadd.f32 %v1792, %v1793
    %v1795 = vrot.slane %v1794, 4
    %v1796 = vadd.f32 %v1794, %v1795
    %v1797 = vrot.slane %v1796, 2
    %v1798 = vadd.f32 %v1796, %v1797
    %v1799 = vrot.slane %v1798, 1
    %v1800 = vadd.f32 %v1798, %v1799
    %v1801 = vadd.f32 %v1473, %v1800
    %v1802 = vld [vmem:[%s13] sm:$0x1]
    %vm1803 = vcmask 122880
    %v1804 = vsel %vm1803, %v1802, 0.0
    %1805 = vadd.xlane.f32.xlu0 %v1804
    %v1806 = vpop.xlane.xlu0 %1805
    %v1807 = vadd.f32 %v1801, %v1806
    %v1808 = vmul.f32 %v1807, 0.0625
    %1810 = vrot.lane.b32.xlu0 %v1808, 120
    %v1811 = vpop.permute.xlu0 %1810
    %vm1813 = vcmask 57344
    %1814 = vst.msk [vmem:[#allocation2] sm:$0x1] %vm1813, %v1811
    %1815 = vrot.lane.b32.xlu0 %v1808, 104
    %v1816 = vpop.permute.xlu0 %1815
    %1818 = vst.msk [vmem:[#allocation2 + $0x1] sm:$0x1] %vm1813, %v1816
    %v1819 = vld [vmem:[#allocation2] sm:$0x3]
    %vm1820 = vcmask 58368
    %v1821 = vsel %vm1820, %v1819, 0.0
    %1822 = vadd.xlane.f32.xlu0 %v1821
    %v1823 = vpop.xlane.xlu0 %1822
    %v1824 = vrcp.pop 8.0
    %v1825 = vmul.f32 %v1823, %v1824
    %v1826 = vsub.f32 %v1819, %v1825
    %v1827 = vmul.f32 %v1826, %v1826
    %v1828 = vsel %vm1820, %v1827, 0.0
    %1829 = vadd.xlane.f32.xlu0 %v1828
    %v1830 = vpop.xlane.xlu0 %1829
    %v1831 = vmul.f32 %v1830, %v1824
    %v1832 = vadd.f32 %v1831, 1e-05
    %v1833 = vrsqrt.pop %v1832
    %v1834 = vmul.f32 %v1826, %v1833
    %v1835 = vld [vmem:[%s14] sm:$0x1]
    %v1837 = vlaneseq
    %v1838 = vshrl.u32 %v1837, 7
    %v1839 = vsub.s32 0, %v1838
    %v1840 = vrot.slane %v1835, %v1839
    %v1842 = vmul.f32 %v1834, %v1840
    %v1843 = vld [vmem:[%s15] sm:$0x1]
    %v1845 = vlaneseq
    %v1846 = vshrl.u32 %v1845, 7
    %v1847 = vsub.s32 0, %v1846
    %v1848 = vrot.slane %v1843, %v1847
    %v1850 = vadd.f32 %v1842, %v1848
    %v1851 = vld [vmem:[%s16] sm:$0xff]
    %v1852 = vld [vmem:[%s17] sm:$0x1]
    %v1854 = vlaneseq
    %v1855 = vshrl.u32 %v1854, 7
    %v1856 = vsub.s32 0, %v1855
    %v1857 = vrot.slane %v1852, %v1856
    %v1860 = vsel %vm635, %v1850, 0
    %1862 = vmatprep.subr.mxu0 0.0
    %1863 = vmatpush1.msra.mxu0 0.0
    %1864 = vmatprep.subr.mxu0 0.0
    %1865 = vmatpush1.msra.mxu0 0.0
    %1866 = vmatprep.subr.mxu0 0.0
    %1867 = vmatpush1.msra.mxu0 0.0
    %1868 = vmatprep.subr.mxu0 0.0
    %1869 = vmatpush1.msra.mxu0 0.0
    %1870 = vmatprep.subr.mxu0 0.0
    %1871 = vmatpush1.msra.mxu0 0.0
    %1872 = vmatprep.subr.mxu0 0.0
    %1873 = vmatpush1.msra.mxu0 0.0
    %1874 = vmatprep.subr.mxu0 0.0
    %1875 = vmatpush1.msra.mxu0 0.0
    %1876 = vmatprep.subr.mxu0 0.0
    %1877 = vmatpush1.msra.mxu0 0.0
    %1878 = vmatprep.subr.mxu0 0.0
    %1879 = vmatpush1.msra.mxu0 0.0
    %1880 = vmatprep.subr.mxu0 0.0
    %1881 = vmatpush1.msra.mxu0 0.0
    %1882 = vmatprep.subr.mxu0 0.0
    %1883 = vmatpush1.msra.mxu0 0.0
    %1884 = vmatprep.subr.mxu0 0.0
    %1885 = vmatpush1.msra.mxu0 0.0
    %1886 = vmatprep.subr.mxu0 0.0
    %1887 = vmatpush1.msra.mxu0 0.0
    %1888 = vmatprep.subr.mxu0 0.0
    %1889 = vmatpush1.msra.mxu0 0.0
    %1890 = vmatprep.subr.mxu0 0.0
    %1891 = vmatpush1.msra.mxu0 0.0
    %1892 = vmatprep.subr.mxu0 0.0
    %1893 = vmatpush1.msra.mxu0 %v1851
    %1894 = vmatprep.subr.mxu0 0.0
    %1895 = vmatpush2.msra.mxu0 0.0
    %1896 = vmatprep.subr.mxu0 0.0
    %1897 = vmatpush2.msra.mxu0 0.0
    %1898 = vmatprep.subr.mxu0 0.0
    %1899 = vmatpush2.msra.mxu0 0.0
    %1900 = vmatprep.subr.mxu0 0.0
    %1901 = vmatpush2.msra.mxu0 0.0
    %1902 = vmatprep.subr.mxu0 0.0
    %1903 = vmatpush2.msra.mxu0 0.0
    %1904 = vmatprep.subr.mxu0 0.0
    %1905 = vmatpush2.msra.mxu0 0.0
    %1906 = vmatprep.subr.mxu0 0.0
    %1907 = vmatpush2.msra.mxu0 0.0
    %1908 = vmatprep.subr.mxu0 0.0
    %1909 = vmatpush2.msra.mxu0 0.0
    %1910 = vmatprep.subr.mxu0 0.0
    %1911 = vmatpush2.msra.mxu0 0.0
    %1912 = vmatprep.subr.mxu0 0.0
    %1913 = vmatpush2.msra.mxu0 0.0
    %1914 = vmatprep.subr.mxu0 0.0
    %1915 = vmatpush2.msra.mxu0 0.0
    %1916 = vmatprep.subr.mxu0 0.0
    %1917 = vmatpush2.msra.mxu0 0.0
    %1918 = vmatprep.subr.mxu0 0.0
    %1919 = vmatpush2.msra.mxu0 0.0
    %1920 = vmatprep.subr.mxu0 0.0
    %1921 = vmatpush2.msra.mxu0 0.0
    %1922 = vmatprep.subr.mxu0 0.0
    %1923 = vmatpush2.msra.mxu0 0.0
    %1924 = vmatprep.subr.mxu0 0.0
    %1925 = vmatpush2.msra.mxu0 0.0
    %1926 = vmatprep.mubr.f32.mxu0 0.0
    %1927 = vmatmul.mubr.f32.gmra.mxu0 %v1860
    %v1928 = vpop.f32.mrf.mxu0
    %v1929 = vadd.f32 %v1857, %v1928
    %v1930 = vpop.f32.mrf.mxu0
    %1931 = vdwg.mxu0
    %v1932 = vmax.f32 %v1929, 0.0
    %v1933 = vld [vmem:[%s18] sm:$0xff]
    %v1934 = vld [vmem:[%s19] sm:$0x1]
    %v1936 = vlaneseq
    %v1937 = vshrl.u32 %v1936, 7
    %v1938 = vsub.s32 0, %v1937
    %v1939 = vrot.slane %v1934, %v1938
    %v1942 = vsel %vm635, %v1932, 0
    %1944 = vmatprep.subr.mxu0 0.0
    %1945 = vmatpush1.msra.mxu0 0.0
    %1946 = vmatprep.subr.mxu0 0.0
    %1947 = vmatpush1.msra.mxu0 0.0
    %1948 = vmatprep.subr.mxu0 0.0
    %1949 = vmatpush1.msra.mxu0 0.0
    %1950 = vmatprep.subr.mxu0 0.0
    %1951 = vmatpush1.msra.mxu0 0.0
    %1952 = vmatprep.subr.mxu0 0.0
    %1953 = vmatpush1.msra.mxu0 0.0
    %1954 = vmatprep.subr.mxu0 0.0
    %1955 = vmatpush1.msra.mxu0 0.0
    %1956 = vmatprep.subr.mxu0 0.0
    %1957 = vmatpush1.msra.mxu0 0.0
    %1958 = vmatprep.subr.mxu0 0.0
    %1959 = vmatpush1.msra.mxu0 0.0
    %1960 = vmatprep.subr.mxu0 0.0
    %1961 = vmatpush1.msra.mxu0 0.0
    %1962 = vmatprep.subr.mxu0 0.0
    %1963 = vmatpush1.msra.mxu0 0.0
    %1964 = vmatprep.subr.mxu0 0.0
    %1965 = vmatpush1.msra.mxu0 0.0
    %1966 = vmatprep.subr.mxu0 0.0
    %1967 = vmatpush1.msra.mxu0 0.0
    %1968 = vmatprep.subr.mxu0 0.0
    %1969 = vmatpush1.msra.mxu0 0.0
    %1970 = vmatprep.subr.mxu0 0.0
    %1971 = vmatpush1.msra.mxu0 0.0
    %1972 = vmatprep.subr.mxu0 0.0
    %1973 = vmatpush1.msra.mxu0 0.0
    %1974 = vmatprep.subr.mxu0 0.0
    %1975 = vmatpush1.msra.mxu0 %v1933
    %1976 = vmatprep.subr.mxu0 0.0
    %1977 = vmatpush2.msra.mxu0 0.0
    %1978 = vmatprep.subr.mxu0 0.0
    %1979 = vmatpush2.msra.mxu0 0.0
    %1980 = vmatprep.subr.mxu0 0.0
    %1981 = vmatpush2.msra.mxu0 0.0
    %1982 = vmatprep.subr.mxu0 0.0
    %1983 = vmatpush2.msra.mxu0 0.0
    %1984 = vmatprep.subr.mxu0 0.0
    %1985 = vmatpush2.msra.mxu0 0.0
    %1986 = vmatprep.subr.mxu0 0.0
    %1987 = vmatpush2.msra.mxu0 0.0
    %1988 = vmatprep.subr.mxu0 0.0
    %1989 = vmatpush2.msra.mxu0 0.0
    %1990 = vmatprep.subr.mxu0 0.0
    %1991 = vmatpush2.msra.mxu0 0.0
    %1992 = vmatprep.subr.mxu0 0.0
    %1993 = vmatpush2.msra.mxu0 0.0
    %1994 = vmatprep.subr.mxu0 0.0
    %1995 = vmatpush2.msra.mxu0 0.0
    %1996 = vmatprep.subr.mxu0 0.0
    %1997 = vmatpush2.msra.mxu0 0.0
    %1998 = vmatprep.subr.mxu0 0.0
    %1999 = vmatpush2.msra.mxu0 0.0
    %2000 = vmatprep.subr.mxu0 0.0
    %2001 = vmatpush2.msra.mxu0 0.0
    %2002 = vmatprep.subr.mxu0 0.0
    %2003 = vmatpush2.msra.mxu0 0.0
    %2004 = vmatprep.subr.mxu0 0.0
    %2005 = vmatpush2.msra.mxu0 0.0
    %2006 = vmatprep.subr.mxu0 0.0
    %2007 = vmatpush2.msra.mxu0 0.0
    %2008 = vmatprep.mubr.f32.mxu0 0.0
    %2009 = vmatmul.mubr.f32.gmra.mxu0 %v1942
    %v2010 = vpop.f32.mrf.mxu0
    %v2011 = vadd.f32 %v1939, %v2010
    %v2012 = vpop.f32.mrf.mxu0
    %2013 = vdwg.mxu0
    %vm2014 = vcmask 25600
    %v2015 = vsel %vm2014, %v2011, -inf
    %2016 = vmax.xlane.f32.xlu0 %v2015
    %v2017 = vpop.xlane.xlu0 %2016
    %v2018 = vsub.f32 %v2011, %v2017
    %v2019 = vmul.f32 %v2018, 1.442695
    %v2020 = vpow.pop %v2019
    %v2021 = vsel %vm2014, %v2020, 0.0
    %2022 = vadd.xlane.f32.xlu0 %v2021
    %v2023 = vpop.xlane.xlu0 %2022
    %v2024 = vlog2.pop %v2023
    %v2025 = vmul.f32 %v2024, 0.6931472
    %v2026 = vsub.f32 %v2018, %v2025
    %2027 = vst.msk [vmem:[#allocation3] sm:$0x3] %vm2014, %v2026
    %v2028 = vsel %vm1820, %v1850, -inf
    %2029 = vmax.xlane.f32.xlu0 %v2028
    %v2030 = vpop.xlane.xlu0 %2029
    %v2031 = vsub.f32 %v1850, %v2030
    %v2032 = vmul.f32 %v2031, 1.442695
    %v2033 = vpow.pop %v2032
    %v2034 = vsel %vm1820, %v2033, 0.0
    %2035 = vadd.xlane.f32.xlu0 %v2034
    %v2036 = vpop.xlane.xlu0 %2035
    %v2037 = vlog2.pop %v2036
    %v2038 = vmul.f32 %v2037, 0.6931472
    %v2039 = vsub.f32 %v2031, %v2038
    %2040 = vst.msk [vmem:[#allocation5] sm:$0x3] %vm1820, %v2039
    // Predicated region
    $region82: #{gat_label_relu_forward.1} parent=1 // pred_check
      _
    $region83: #{gat_label_relu_forward.1} parent=1 // pred_check_branch
      %2042 = sbr.rel (0) target = $region85
    $region84: #{gat_label_relu_forward.1} parent=1 // pred_region
      %s2044 = ssub.s32 32, 32
      %2045 = vsyncadd [#allocation4], %s2044
      %s2047 = sshll.u32 [#allocation3], 4
      %s2048 = int_to_ptr.vmem [resolvable:$true] %s2047
      %2050 = dma.vmem_to_hbm [thread:$0]  %s2048, 32, %s20, [#allocation4]
    $region85: #{gat_label_relu_forward.1} parent=1 // pred_fallthru
      _
    // Predicated region
    $region86: #{gat_label_relu_forward.1} parent=1 // pred_check
      _
    $region87: #{gat_label_relu_forward.1} parent=1 // pred_check_branch
      %2052 = sbr.rel (0) target = $region89
    $region88: #{gat_label_relu_forward.1} parent=1 // pred_region
      %s2054 = ssub.s32 32, 32
      %2055 = vsyncadd [#allocation6], %s2054
      %s2057 = sshll.u32 [#allocation5], 4
      %s2058 = int_to_ptr.vmem [resolvable:$true] %s2057
      %2060 = dma.vmem_to_hbm [thread:$0]  %s2058, 32, %s21, [#allocation6]
    $region89: #{gat_label_relu_forward.1} parent=1 // pred_fallthru
      _
    // Predicated region
    $region90: #{gat_label_relu_forward.1} parent=1 // pred_check
      _
    $region91: #{gat_label_relu_forward.1} parent=1 // pred_check_branch
      %2062 = sbr.rel (0) target = $region93
    $region92: #{gat_label_relu_forward.1} parent=1 // pred_region
      %2063 = dma.done [#allocation4], 32
    $region93: #{gat_label_relu_forward.1} parent=1 // pred_fallthru
      _
    // Predicated region
    $region94: #{gat_label_relu_forward.1} parent=1 // pred_check
      _
    $region95: #{gat_label_relu_forward.1} parent=1 // pred_check_branch
      %2065 = sbr.rel (0) target = $region97
    $region96: #{gat_label_relu_forward.1} parent=1 // pred_region
      %2066 = dma.done [#allocation6], 32
    $region97: #{gat_label_relu_forward.1} parent=1 // pred_fallthru
      _
    %2067 = vsyncpa [#allocation4], 1
    %2068 = vsyncpa [#allocation6], 1

</llo_original>
